<compile_context>
chip_gen: v7x
topology: tpu7x:2x2x1
jax: 0.10.0
libtpu: 0.0.40
codegen_flags: <defaults>
</compile_context>

<pallas_src>
import functools

import numpy as np
import jax
import jax.numpy as jnp
from jax import lax
from jax.experimental import pallas as pl
from jax.experimental.pallas import tpu as pltpu


# ----------------------------------------------------------------------------
# Boundary masks for the 9 taps, precomputed on host (trace-time constants).
# Tap order t = (dh+1)*3 + (dw+1)  (== kh*3 + kw of the 3x3 kernel).
# ----------------------------------------------------------------------------
def _tap_masks(H, W):
    hw = H * W
    row = np.arange(hw) // W
    col = np.arange(hw) % W
    masks = np.empty((9, 1, hw), np.float32)
    t = 0
    for dh in (-1, 0, 1):
        for dw in (-1, 0, 1):
            ok = np.ones(hw, bool)
            if dh == -1:
                ok &= row >= 1
            if dh == 1:
                ok &= row <= H - 2
            if dw == -1:
                ok &= col >= 1
            if dw == 1:
                ok &= col <= W - 2
            masks[t, 0] = ok.astype(np.float32)
            t += 1
    return jnp.asarray(masks)


# ----------------------------------------------------------------------------
# Pallas kernel: one batch element, fused conv3x3 -> ReLU -> conv3x3.
# Layout inside the kernel: channels on sublanes, flattened H*W on lanes.
# ----------------------------------------------------------------------------
def _flowocc_kernel(x_ref, w1_ref, b1_ref, w2_ref, b2_ref, m_ref, o_ref, *, H, W):
    HW = H * W

    def conv3x3(x2d, w_ref, b_ref):
        # x2d: (C, HW) f32; w_ref: (9, Cout, C); b_ref: (Cout, 1).
        cout = w_ref.shape[1]
        acc = jnp.zeros((cout, HW), jnp.float32)
        t = 0
        for dh in (-1, 0, 1):
            for dw in (-1, 0, 1):
                # tap[p] = x2d[:, p + dh*W + dw]  (np.roll semantics).
                shift = (-(dh * W + dw)) % HW
                tap = x2d if shift == 0 else pltpu.roll(x2d, shift, axis=1)
                if dh != 0 or dw != 0:
                    tap = tap * m_ref[t]          # zero out wrapped-in pixels
                acc = acc + jnp.dot(w_ref[t], tap,
                                    preferred_element_type=jnp.float32)
                t += 1
        return acc + b_ref[...]                   # (Cout, 1) lane-broadcast

    x = x_ref[0].astype(jnp.float32)              # (Cin, HW)
    mid = conv3x3(x, w1_ref, b1_ref)              # (c_mid, HW), f32
    mid = jnp.maximum(mid, 0.0)                   # ReLU, stays f32
    out = conv3x3(mid, w2_ref, b2_ref)            # (c_out, HW), f32
    o_ref[0] = out.astype(o_ref.dtype)


# ----------------------------------------------------------------------------
# Wrapper: NCHW in / NCHW out (PyTorch semantics), single fused pallas_call,
# no transposes (only free reshapes at the HBM-facing boundary).
# ----------------------------------------------------------------------------
def flow_occ(x, params):
    """x: (B, Cin, H, W) -> (B, 5, H, W); out = conv2(relu(conv1(x)))."""
    w1, b1, w2, b2 = params["w1"], params["b1"], params["w2"], params["b2"]
    B, c_in, H, W = x.shape
    HW = H * W
    c_mid = w1.shape[1]
    c_out = w2.shape[1]

    x2 = x.reshape(B, c_in, HW)                   # free: NCHW is channels-major
    masks = _tap_masks(H, W)                      # (9, 1, HW) constants

    out2 = pl.pallas_call(
        functools.partial(_flowocc_kernel, H=H, W=W),
        out_shape=jax.ShapeDtypeStruct((B, c_out, HW), x.dtype),
        grid_spec=pltpu.PrefetchScalarGridSpec(
            num_scalar_prefetch=0,
            grid=(B,),
            in_specs=[
                pl.BlockSpec((1, c_in, HW), lambda b: (b, 0, 0)),
                pl.BlockSpec((9, c_mid, c_in), lambda b: (0, 0, 0)),
                pl.BlockSpec((c_mid, 1), lambda b: (0, 0)),
                pl.BlockSpec((9, c_out, c_mid), lambda b: (0, 0, 0)),
                pl.BlockSpec((c_out, 1), lambda b: (0, 0)),
                pl.BlockSpec((9, 1, HW), lambda b: (0, 0, 0)),
            ],
            out_specs=pl.BlockSpec((1, c_out, HW), lambda b: (b, 0, 0)),
        ),
        compiler_params=pltpu.CompilerParams(
            dimension_semantics=("parallel",),
            vmem_limit_bytes=32 * 1024 * 1024),
    )(x2, w1, b1, w2, b2, masks)

    return out2.reshape(B, c_out, H, W)           # free metadata reshape


# ----------------------------------------------------------------------------
# Deterministic parameter init.
# Conv weights stored as (9, Cout, Cin) with tap index t = kh*3 + kw, i.e.
#   w_torch[co, ci, kh, kw] == w[kh*3 + kw, co, ci];   bias stored as (Cout, 1).
# ----------------------------------------------------------------------------
def init_params(key, x_dim, nf):
    c_mid, c_out = nf // 2, 5
    k1, k2, k3, k4 = jax.random.split(key, 4)
    w1 = jax.random.normal(k1, (9, c_mid, x_dim), jnp.float32) * 0.1
    b1 = jax.random.normal(k2, (c_mid, 1), jnp.float32) * 0.1
    w2 = jax.random.normal(k3, (9, c_out, c_mid), jnp.float32) * 0.1
    b2 = jax.random.normal(k4, (c_out, 1), jnp.float32) * 0.1
    return {"w1": w1, "b1": b1, "w2": w2, "b2": b2}


# ----------------------------------------------------------------------------
# Pure-JAX reference (lax.conv, NCHW/OIHW like PyTorch) for verification.
# ----------------------------------------------------------------------------
def _to_oihw(w):
    _, co, ci = w.shape
    return jnp.transpose(w.reshape(3, 3, co, ci), (2, 3, 0, 1))   # (co,ci,kh,kw)


def flow_occ_ref(x, params):
    y = lax.conv_general_dilated(
        x, _to_oihw(params["w1"]), (1, 1), [(1, 1), (1, 1)],
        dimension_numbers=("NCHW", "OIHW", "NCHW"))
    y = jax.nn.relu(y + params["b1"].reshape(1, -1, 1, 1))
    y = lax.conv_general_dilated(
        y, _to_oihw(params["w2"]), (1, 1), [(1, 1), (1, 1)],
        dimension_numbers=("NCHW", "OIHW", "NCHW"))
    return y + params["b2"].reshape(1, -1, 1, 1)


if __name__ == "__main__":
    B, x_dim, nf, H, W = 2, 4, 32, 16, 16        # conv1: 4->16, conv2: 16->5

    key = jax.random.PRNGKey(0)
    kx, kp = jax.random.split(key)
    x0 = jax.random.normal(kx, (B, x_dim, H, W), jnp.float32)
    params = init_params(kp, x_dim, nf)

    out = jax.block_until_ready(jax.jit(flow_occ)(x0, params))
    ref = jax.block_until_ready(jax.jit(flow_occ_ref)(x0, params))

    assert out.shape == (B, 5, H, W)
    max_err = float(jnp.max(jnp.abs(out - ref)))
    assert jnp.allclose(out, ref, atol=1e-4, rtol=1e-4), (
        "mismatch vs reference: max abs err = %g" % max_err)

    print("KERNEL_OK")
</pallas_src>

<mosaic_0001>
module attributes {stable_mosaic.version = 11 : i64} {
  func.func @_flowocc_kernel(%arg0: i32, %arg1: memref<1x4x256xf32, #tpu.memory_space<vmem>>, %arg2: memref<9x16x4xf32, #tpu.memory_space<vmem>>, %arg3: memref<16x1xf32, #tpu.memory_space<vmem>>, %arg4: memref<9x5x16xf32, #tpu.memory_space<vmem>>, %arg5: memref<5x1xf32, #tpu.memory_space<vmem>>, %arg6: memref<9x1x256xf32, #tpu.memory_space<vmem>>, %arg7: memref<1x5x256xf32, #tpu.memory_space<vmem>>) attributes {dimension_semantics = [#tpu.dimension_semantics<parallel>], iteration_bounds = array<i64: 2>, scalar_prefetch = 0 : i64, scratch_operands = 0 : i64, tpu.core_type = #tpu.core_type<tc>, window_params = [{transform_indices = @transform_0, window_bounds = array<i64: 1, 4, 256>}, {pipeline_mode = #tpu.pipeline_mode<synchronous>, transform_indices = @transform_1, window_bounds = array<i64: 9, 16, 4>}, {pipeline_mode = #tpu.pipeline_mode<synchronous>, transform_indices = @transform_2, window_bounds = array<i64: 16, 1>}, {pipeline_mode = #tpu.pipeline_mode<synchronous>, transform_indices = @transform_3, window_bounds = array<i64: 9, 5, 16>}, {pipeline_mode = #tpu.pipeline_mode<synchronous>, transform_indices = @transform_4, window_bounds = array<i64: 5, 1>}, {pipeline_mode = #tpu.pipeline_mode<synchronous>, transform_indices = @transform_5, window_bounds = array<i64: 9, 1, 256>}, {transform_indices = @transform_6, window_bounds = array<i64: 1, 5, 256>}]} {
    %c0 = arith.constant 0 : index
    %c0_0 = arith.constant 0 : index
    %c0_1 = arith.constant 0 : index
    %0 = vector.load %arg1[%c0, %c0_0, %c0_1] : memref<1x4x256xf32, #tpu.memory_space<vmem>>, vector<1x4x256xf32>
    %1 = vector.shape_cast %0 : vector<1x4x256xf32> to vector<4x256xf32>
    %cst = arith.constant 0.000000e+00 : f32
    %2 = vector.broadcast %cst : f32 to vector<16x256xf32>
    %c17_i32 = arith.constant 17 : i32
    %3 = tpu.dynamic_rotate %1 by %c17_i32 dim 1 : vector<4x256xf32>, i32 -> vector<4x256xf32>
    %c0_2 = arith.constant 0 : index
    %c0_3 = arith.constant 0 : index
    %c0_4 = arith.constant 0 : index
    %4 = vector.load %arg6[%c0_2, %c0_3, %c0_4] : memref<9x1x256xf32, #tpu.memory_space<vmem>>, vector<1x1x256xf32>
    %5 = vector.shape_cast %4 : vector<1x1x256xf32> to vector<1x256xf32>
    %6 = vector.broadcast %5 : vector<1x256xf32> to vector<4x256xf32>
    %7 = arith.mulf %3, %6 : vector<4x256xf32>
    %c0_5 = arith.constant 0 : index
    %c0_6 = arith.constant 0 : index
    %c0_7 = arith.constant 0 : index
    %8 = vector.load %arg2[%c0_5, %c0_6, %c0_7] : memref<9x16x4xf32, #tpu.memory_space<vmem>>, vector<1x16x4xf32>
    %9 = vector.shape_cast %8 : vector<1x16x4xf32> to vector<16x4xf32>
    %cst_8 = arith.constant dense<0.000000e+00> : vector<16x256xf32>
    %10 = tpu.matmul %9, %7, %cst_8 {dimension_numbers = #tpu.dot_dimension_numbers<[1], [0], [0], [1], [0, 0, 1, 1], [], []>} : vector<16x4xf32>, vector<4x256xf32>, vector<16x256xf32> -> vector<16x256xf32>
    %11 = arith.addf %2, %10 : vector<16x256xf32>
    %c16_i32 = arith.constant 16 : i32
    %12 = tpu.dynamic_rotate %1 by %c16_i32 dim 1 : vector<4x256xf32>, i32 -> vector<4x256xf32>
    %c1 = arith.constant 1 : index
    %c0_9 = arith.constant 0 : index
    %c0_10 = arith.constant 0 : index
    %13 = vector.load %arg6[%c1, %c0_9, %c0_10] : memref<9x1x256xf32, #tpu.memory_space<vmem>>, vector<1x1x256xf32>
    %14 = vector.shape_cast %13 : vector<1x1x256xf32> to vector<1x256xf32>
    %15 = vector.broadcast %14 : vector<1x256xf32> to vector<4x256xf32>
    %16 = arith.mulf %12, %15 : vector<4x256xf32>
    %c1_11 = arith.constant 1 : index
    %c0_12 = arith.constant 0 : index
    %c0_13 = arith.constant 0 : index
    %17 = vector.load %arg2[%c1_11, %c0_12, %c0_13] : memref<9x16x4xf32, #tpu.memory_space<vmem>>, vector<1x16x4xf32>
    %18 = vector.shape_cast %17 : vector<1x16x4xf32> to vector<16x4xf32>
    %cst_14 = arith.constant dense<0.000000e+00> : vector<16x256xf32>
    %19 = tpu.matmul %18, %16, %cst_14 {dimension_numbers = #tpu.dot_dimension_numbers<[1], [0], [0], [1], [0, 0, 1, 1], [], []>} : vector<16x4xf32>, vector<4x256xf32>, vector<16x256xf32> -> vector<16x256xf32>
    %20 = arith.addf %11, %19 : vector<16x256xf32>
    %c15_i32 = arith.constant 15 : i32
    %21 = tpu.dynamic_rotate %1 by %c15_i32 dim 1 : vector<4x256xf32>, i32 -> vector<4x256xf32>
    %c2 = arith.constant 2 : index
    %c0_15 = arith.constant 0 : index
    %c0_16 = arith.constant 0 : index
    %22 = vector.load %arg6[%c2, %c0_15, %c0_16] : memref<9x1x256xf32, #tpu.memory_space<vmem>>, vector<1x1x256xf32>
    %23 = vector.shape_cast %22 : vector<1x1x256xf32> to vector<1x256xf32>
    %24 = vector.broadcast %23 : vector<1x256xf32> to vector<4x256xf32>
    %25 = arith.mulf %21, %24 : vector<4x256xf32>
    %c2_17 = arith.constant 2 : index
    %c0_18 = arith.constant 0 : index
    %c0_19 = arith.constant 0 : index
    %26 = vector.load %arg2[%c2_17, %c0_18, %c0_19] : memref<9x16x4xf32, #tpu.memory_space<vmem>>, vector<1x16x4xf32>
    %27 = vector.shape_cast %26 : vector<1x16x4xf32> to vector<16x4xf32>
    %cst_20 = arith.constant dense<0.000000e+00> : vector<16x256xf32>
    %28 = tpu.matmul %27, %25, %cst_20 {dimension_numbers = #tpu.dot_dimension_numbers<[1], [0], [0], [1], [0, 0, 1, 1], [], []>} : vector<16x4xf32>, vector<4x256xf32>, vector<16x256xf32> -> vector<16x256xf32>
    %29 = arith.addf %20, %28 : vector<16x256xf32>
    %c1_i32 = arith.constant 1 : i32
    %30 = tpu.dynamic_rotate %1 by %c1_i32 dim 1 : vector<4x256xf32>, i32 -> vector<4x256xf32>
    %c3 = arith.constant 3 : index
    %c0_21 = arith.constant 0 : index
    %c0_22 = arith.constant 0 : index
    %31 = vector.load %arg6[%c3, %c0_21, %c0_22] : memref<9x1x256xf32, #tpu.memory_space<vmem>>, vector<1x1x256xf32>
    %32 = vector.shape_cast %31 : vector<1x1x256xf32> to vector<1x256xf32>
    %33 = vector.broadcast %32 : vector<1x256xf32> to vector<4x256xf32>
    %34 = arith.mulf %30, %33 : vector<4x256xf32>
    %c3_23 = arith.constant 3 : index
    %c0_24 = arith.constant 0 : index
    %c0_25 = arith.constant 0 : index
    %35 = vector.load %arg2[%c3_23, %c0_24, %c0_25] : memref<9x16x4xf32, #tpu.memory_space<vmem>>, vector<1x16x4xf32>
    %36 = vector.shape_cast %35 : vector<1x16x4xf32> to vector<16x4xf32>
    %cst_26 = arith.constant dense<0.000000e+00> : vector<16x256xf32>
    %37 = tpu.matmul %36, %34, %cst_26 {dimension_numbers = #tpu.dot_dimension_numbers<[1], [0], [0], [1], [0, 0, 1, 1], [], []>} : vector<16x4xf32>, vector<4x256xf32>, vector<16x256xf32> -> vector<16x256xf32>
    %38 = arith.addf %29, %37 : vector<16x256xf32>
    %c4 = arith.constant 4 : index
    %c0_27 = arith.constant 0 : index
    %c0_28 = arith.constant 0 : index
    %39 = vector.load %arg2[%c4, %c0_27, %c0_28] : memref<9x16x4xf32, #tpu.memory_space<vmem>>, vector<1x16x4xf32>
    %40 = vector.shape_cast %39 : vector<1x16x4xf32> to vector<16x4xf32>
    %cst_29 = arith.constant dense<0.000000e+00> : vector<16x256xf32>
    %41 = tpu.matmul %40, %1, %cst_29 {dimension_numbers = #tpu.dot_dimension_numbers<[1], [0], [0], [1], [0, 0, 1, 1], [], []>} : vector<16x4xf32>, vector<4x256xf32>, vector<16x256xf32> -> vector<16x256xf32>
    %42 = arith.addf %38, %41 : vector<16x256xf32>
    %c255_i32 = arith.constant 255 : i32
    %43 = tpu.dynamic_rotate %1 by %c255_i32 dim 1 : vector<4x256xf32>, i32 -> vector<4x256xf32>
    %c5 = arith.constant 5 : index
    %c0_30 = arith.constant 0 : index
    %c0_31 = arith.constant 0 : index
    %44 = vector.load %arg6[%c5, %c0_30, %c0_31] : memref<9x1x256xf32, #tpu.memory_space<vmem>>, vector<1x1x256xf32>
    %45 = vector.shape_cast %44 : vector<1x1x256xf32> to vector<1x256xf32>
    %46 = vector.broadcast %45 : vector<1x256xf32> to vector<4x256xf32>
    %47 = arith.mulf %43, %46 : vector<4x256xf32>
    %c5_32 = arith.constant 5 : index
    %c0_33 = arith.constant 0 : index
    %c0_34 = arith.constant 0 : index
    %48 = vector.load %arg2[%c5_32, %c0_33, %c0_34] : memref<9x16x4xf32, #tpu.memory_space<vmem>>, vector<1x16x4xf32>
    %49 = vector.shape_cast %48 : vector<1x16x4xf32> to vector<16x4xf32>
    %cst_35 = arith.constant dense<0.000000e+00> : vector<16x256xf32>
    %50 = tpu.matmul %49, %47, %cst_35 {dimension_numbers = #tpu.dot_dimension_numbers<[1], [0], [0], [1], [0, 0, 1, 1], [], []>} : vector<16x4xf32>, vector<4x256xf32>, vector<16x256xf32> -> vector<16x256xf32>
    %51 = arith.addf %42, %50 : vector<16x256xf32>
    %c241_i32 = arith.constant 241 : i32
    %52 = tpu.dynamic_rotate %1 by %c241_i32 dim 1 : vector<4x256xf32>, i32 -> vector<4x256xf32>
    %c6 = arith.constant 6 : index
    %c0_36 = arith.constant 0 : index
    %c0_37 = arith.constant 0 : index
    %53 = vector.load %arg6[%c6, %c0_36, %c0_37] : memref<9x1x256xf32, #tpu.memory_space<vmem>>, vector<1x1x256xf32>
    %54 = vector.shape_cast %53 : vector<1x1x256xf32> to vector<1x256xf32>
    %55 = vector.broadcast %54 : vector<1x256xf32> to vector<4x256xf32>
    %56 = arith.mulf %52, %55 : vector<4x256xf32>
    %c6_38 = arith.constant 6 : index
    %c0_39 = arith.constant 0 : index
    %c0_40 = arith.constant 0 : index
    %57 = vector.load %arg2[%c6_38, %c0_39, %c0_40] : memref<9x16x4xf32, #tpu.memory_space<vmem>>, vector<1x16x4xf32>
    %58 = vector.shape_cast %57 : vector<1x16x4xf32> to vector<16x4xf32>
    %cst_41 = arith.constant dense<0.000000e+00> : vector<16x256xf32>
    %59 = tpu.matmul %58, %56, %cst_41 {dimension_numbers = #tpu.dot_dimension_numbers<[1], [0], [0], [1], [0, 0, 1, 1], [], []>} : vector<16x4xf32>, vector<4x256xf32>, vector<16x256xf32> -> vector<16x256xf32>
    %60 = arith.addf %51, %59 : vector<16x256xf32>
    %c240_i32 = arith.constant 240 : i32
    %61 = tpu.dynamic_rotate %1 by %c240_i32 dim 1 : vector<4x256xf32>, i32 -> vector<4x256xf32>
    %c7 = arith.constant 7 : index
    %c0_42 = arith.constant 0 : index
    %c0_43 = arith.constant 0 : index
    %62 = vector.load %arg6[%c7, %c0_42, %c0_43] : memref<9x1x256xf32, #tpu.memory_space<vmem>>, vector<1x1x256xf32>
    %63 = vector.shape_cast %62 : vector<1x1x256xf32> to vector<1x256xf32>
    %64 = vector.broadcast %63 : vector<1x256xf32> to vector<4x256xf32>
    %65 = arith.mulf %61, %64 : vector<4x256xf32>
    %c7_44 = arith.constant 7 : index
    %c0_45 = arith.constant 0 : index
    %c0_46 = arith.constant 0 : index
    %66 = vector.load %arg2[%c7_44, %c0_45, %c0_46] : memref<9x16x4xf32, #tpu.memory_space<vmem>>, vector<1x16x4xf32>
    %67 = vector.shape_cast %66 : vector<1x16x4xf32> to vector<16x4xf32>
    %cst_47 = arith.constant dense<0.000000e+00> : vector<16x256xf32>
    %68 = tpu.matmul %67, %65, %cst_47 {dimension_numbers = #tpu.dot_dimension_numbers<[1], [0], [0], [1], [0, 0, 1, 1], [], []>} : vector<16x4xf32>, vector<4x256xf32>, vector<16x256xf32> -> vector<16x256xf32>
    %69 = arith.addf %60, %68 : vector<16x256xf32>
    %c239_i32 = arith.constant 239 : i32
    %70 = tpu.dynamic_rotate %1 by %c239_i32 dim 1 : vector<4x256xf32>, i32 -> vector<4x256xf32>
    %c8 = arith.constant 8 : index
    %c0_48 = arith.constant 0 : index
    %c0_49 = arith.constant 0 : index
    %71 = vector.load %arg6[%c8, %c0_48, %c0_49] : memref<9x1x256xf32, #tpu.memory_space<vmem>>, vector<1x1x256xf32>
    %72 = vector.shape_cast %71 : vector<1x1x256xf32> to vector<1x256xf32>
    %73 = vector.broadcast %72 : vector<1x256xf32> to vector<4x256xf32>
    %74 = arith.mulf %70, %73 : vector<4x256xf32>
    %c8_50 = arith.constant 8 : index
    %c0_51 = arith.constant 0 : index
    %c0_52 = arith.constant 0 : index
    %75 = vector.load %arg2[%c8_50, %c0_51, %c0_52] : memref<9x16x4xf32, #tpu.memory_space<vmem>>, vector<1x16x4xf32>
    %76 = vector.shape_cast %75 : vector<1x16x4xf32> to vector<16x4xf32>
    %cst_53 = arith.constant dense<0.000000e+00> : vector<16x256xf32>
    %77 = tpu.matmul %76, %74, %cst_53 {dimension_numbers = #tpu.dot_dimension_numbers<[1], [0], [0], [1], [0, 0, 1, 1], [], []>} : vector<16x4xf32>, vector<4x256xf32>, vector<16x256xf32> -> vector<16x256xf32>
    %78 = arith.addf %69, %77 : vector<16x256xf32>
    %c0_54 = arith.constant 0 : index
    %c0_55 = arith.constant 0 : index
    %79 = vector.load %arg3[%c0_54, %c0_55] : memref<16x1xf32, #tpu.memory_space<vmem>>, vector<16x1xf32>
    %80 = vector.broadcast %79 : vector<16x1xf32> to vector<16x256xf32>
    %81 = arith.addf %78, %80 : vector<16x256xf32>
    %cst_56 = arith.constant 0.000000e+00 : f32
    %82 = vector.broadcast %cst_56 : f32 to vector<16x256xf32>
    %83 = arith.maximumf %81, %82 : vector<16x256xf32>
    %cst_57 = arith.constant 0.000000e+00 : f32
    %84 = vector.broadcast %cst_57 : f32 to vector<5x256xf32>
    %c17_i32_58 = arith.constant 17 : i32
    %85 = tpu.dynamic_rotate %83 by %c17_i32_58 dim 1 : vector<16x256xf32>, i32 -> vector<16x256xf32>
    %c0_59 = arith.constant 0 : index
    %c0_60 = arith.constant 0 : index
    %c0_61 = arith.constant 0 : index
    %86 = vector.load %arg6[%c0_59, %c0_60, %c0_61] : memref<9x1x256xf32, #tpu.memory_space<vmem>>, vector<1x1x256xf32>
    %87 = vector.shape_cast %86 : vector<1x1x256xf32> to vector<1x256xf32>
    %88 = vector.broadcast %87 : vector<1x256xf32> to vector<16x256xf32>
    %89 = arith.mulf %85, %88 : vector<16x256xf32>
    %c0_62 = arith.constant 0 : index
    %c0_63 = arith.constant 0 : index
    %c0_64 = arith.constant 0 : index
    %90 = vector.load %arg4[%c0_62, %c0_63, %c0_64] : memref<9x5x16xf32, #tpu.memory_space<vmem>>, vector<1x5x16xf32>
    %91 = vector.shape_cast %90 : vector<1x5x16xf32> to vector<5x16xf32>
    %cst_65 = arith.constant dense<0.000000e+00> : vector<5x256xf32>
    %92 = tpu.matmul %91, %89, %cst_65 {dimension_numbers = #tpu.dot_dimension_numbers<[1], [0], [0], [1], [0, 0, 1, 1], [], []>} : vector<5x16xf32>, vector<16x256xf32>, vector<5x256xf32> -> vector<5x256xf32>
    %93 = arith.addf %84, %92 : vector<5x256xf32>
    %c16_i32_66 = arith.constant 16 : i32
    %94 = tpu.dynamic_rotate %83 by %c16_i32_66 dim 1 : vector<16x256xf32>, i32 -> vector<16x256xf32>
    %c1_67 = arith.constant 1 : index
    %c0_68 = arith.constant 0 : index
    %c0_69 = arith.constant 0 : index
    %95 = vector.load %arg6[%c1_67, %c0_68, %c0_69] : memref<9x1x256xf32, #tpu.memory_space<vmem>>, vector<1x1x256xf32>
    %96 = vector.shape_cast %95 : vector<1x1x256xf32> to vector<1x256xf32>
    %97 = vector.broadcast %96 : vector<1x256xf32> to vector<16x256xf32>
    %98 = arith.mulf %94, %97 : vector<16x256xf32>
    %c1_70 = arith.constant 1 : index
    %c0_71 = arith.constant 0 : index
    %c0_72 = arith.constant 0 : index
    %99 = vector.load %arg4[%c1_70, %c0_71, %c0_72] : memref<9x5x16xf32, #tpu.memory_space<vmem>>, vector<1x5x16xf32>
    %100 = vector.shape_cast %99 : vector<1x5x16xf32> to vector<5x16xf32>
    %cst_73 = arith.constant dense<0.000000e+00> : vector<5x256xf32>
    %101 = tpu.matmul %100, %98, %cst_73 {dimension_numbers = #tpu.dot_dimension_numbers<[1], [0], [0], [1], [0, 0, 1, 1], [], []>} : vector<5x16xf32>, vector<16x256xf32>, vector<5x256xf32> -> vector<5x256xf32>
    %102 = arith.addf %93, %101 : vector<5x256xf32>
    %c15_i32_74 = arith.constant 15 : i32
    %103 = tpu.dynamic_rotate %83 by %c15_i32_74 dim 1 : vector<16x256xf32>, i32 -> vector<16x256xf32>
    %c2_75 = arith.constant 2 : index
    %c0_76 = arith.constant 0 : index
    %c0_77 = arith.constant 0 : index
    %104 = vector.load %arg6[%c2_75, %c0_76, %c0_77] : memref<9x1x256xf32, #tpu.memory_space<vmem>>, vector<1x1x256xf32>
    %105 = vector.shape_cast %104 : vector<1x1x256xf32> to vector<1x256xf32>
    %106 = vector.broadcast %105 : vector<1x256xf32> to vector<16x256xf32>
    %107 = arith.mulf %103, %106 : vector<16x256xf32>
    %c2_78 = arith.constant 2 : index
    %c0_79 = arith.constant 0 : index
    %c0_80 = arith.constant 0 : index
    %108 = vector.load %arg4[%c2_78, %c0_79, %c0_80] : memref<9x5x16xf32, #tpu.memory_space<vmem>>, vector<1x5x16xf32>
    %109 = vector.shape_cast %108 : vector<1x5x16xf32> to vector<5x16xf32>
    %cst_81 = arith.constant dense<0.000000e+00> : vector<5x256xf32>
    %110 = tpu.matmul %109, %107, %cst_81 {dimension_numbers = #tpu.dot_dimension_numbers<[1], [0], [0], [1], [0, 0, 1, 1], [], []>} : vector<5x16xf32>, vector<16x256xf32>, vector<5x256xf32> -> vector<5x256xf32>
    %111 = arith.addf %102, %110 : vector<5x256xf32>
    %c1_i32_82 = arith.constant 1 : i32
    %112 = tpu.dynamic_rotate %83 by %c1_i32_82 dim 1 : vector<16x256xf32>, i32 -> vector<16x256xf32>
    %c3_83 = arith.constant 3 : index
    %c0_84 = arith.constant 0 : index
    %c0_85 = arith.constant 0 : index
    %113 = vector.load %arg6[%c3_83, %c0_84, %c0_85] : memref<9x1x256xf32, #tpu.memory_space<vmem>>, vector<1x1x256xf32>
    %114 = vector.shape_cast %113 : vector<1x1x256xf32> to vector<1x256xf32>
    %115 = vector.broadcast %114 : vector<1x256xf32> to vector<16x256xf32>
    %116 = arith.mulf %112, %115 : vector<16x256xf32>
    %c3_86 = arith.constant 3 : index
    %c0_87 = arith.constant 0 : index
    %c0_88 = arith.constant 0 : index
    %117 = vector.load %arg4[%c3_86, %c0_87, %c0_88] : memref<9x5x16xf32, #tpu.memory_space<vmem>>, vector<1x5x16xf32>
    %118 = vector.shape_cast %117 : vector<1x5x16xf32> to vector<5x16xf32>
    %cst_89 = arith.constant dense<0.000000e+00> : vector<5x256xf32>
    %119 = tpu.matmul %118, %116, %cst_89 {dimension_numbers = #tpu.dot_dimension_numbers<[1], [0], [0], [1], [0, 0, 1, 1], [], []>} : vector<5x16xf32>, vector<16x256xf32>, vector<5x256xf32> -> vector<5x256xf32>
    %120 = arith.addf %111, %119 : vector<5x256xf32>
    %c4_90 = arith.constant 4 : index
    %c0_91 = arith.constant 0 : index
    %c0_92 = arith.constant 0 : index
    %121 = vector.load %arg4[%c4_90, %c0_91, %c0_92] : memref<9x5x16xf32, #tpu.memory_space<vmem>>, vector<1x5x16xf32>
    %122 = vector.shape_cast %121 : vector<1x5x16xf32> to vector<5x16xf32>
    %cst_93 = arith.constant dense<0.000000e+00> : vector<5x256xf32>
    %123 = tpu.matmul %122, %83, %cst_93 {dimension_numbers = #tpu.dot_dimension_numbers<[1], [0], [0], [1], [0, 0, 1, 1], [], []>} : vector<5x16xf32>, vector<16x256xf32>, vector<5x256xf32> -> vector<5x256xf32>
    %124 = arith.addf %120, %123 : vector<5x256xf32>
    %c255_i32_94 = arith.constant 255 : i32
    %125 = tpu.dynamic_rotate %83 by %c255_i32_94 dim 1 : vector<16x256xf32>, i32 -> vector<16x256xf32>
    %c5_95 = arith.constant 5 : index
    %c0_96 = arith.constant 0 : index
    %c0_97 = arith.constant 0 : index
    %126 = vector.load %arg6[%c5_95, %c0_96, %c0_97] : memref<9x1x256xf32, #tpu.memory_space<vmem>>, vector<1x1x256xf32>
    %127 = vector.shape_cast %126 : vector<1x1x256xf32> to vector<1x256xf32>
    %128 = vector.broadcast %127 : vector<1x256xf32> to vector<16x256xf32>
    %129 = arith.mulf %125, %128 : vector<16x256xf32>
    %c5_98 = arith.constant 5 : index
    %c0_99 = arith.constant 0 : index
    %c0_100 = arith.constant 0 : index
    %130 = vector.load %arg4[%c5_98, %c0_99, %c0_100] : memref<9x5x16xf32, #tpu.memory_space<vmem>>, vector<1x5x16xf32>
    %131 = vector.shape_cast %130 : vector<1x5x16xf32> to vector<5x16xf32>
    %cst_101 = arith.constant dense<0.000000e+00> : vector<5x256xf32>
    %132 = tpu.matmul %131, %129, %cst_101 {dimension_numbers = #tpu.dot_dimension_numbers<[1], [0], [0], [1], [0, 0, 1, 1], [], []>} : vector<5x16xf32>, vector<16x256xf32>, vector<5x256xf32> -> vector<5x256xf32>
    %133 = arith.addf %124, %132 : vector<5x256xf32>
    %c241_i32_102 = arith.constant 241 : i32
    %134 = tpu.dynamic_rotate %83 by %c241_i32_102 dim 1 : vector<16x256xf32>, i32 -> vector<16x256xf32>
    %c6_103 = arith.constant 6 : index
    %c0_104 = arith.constant 0 : index
    %c0_105 = arith.constant 0 : index
    %135 = vector.load %arg6[%c6_103, %c0_104, %c0_105] : memref<9x1x256xf32, #tpu.memory_space<vmem>>, vector<1x1x256xf32>
    %136 = vector.shape_cast %135 : vector<1x1x256xf32> to vector<1x256xf32>
    %137 = vector.broadcast %136 : vector<1x256xf32> to vector<16x256xf32>
    %138 = arith.mulf %134, %137 : vector<16x256xf32>
    %c6_106 = arith.constant 6 : index
    %c0_107 = arith.constant 0 : index
    %c0_108 = arith.constant 0 : index
    %139 = vector.load %arg4[%c6_106, %c0_107, %c0_108] : memref<9x5x16xf32, #tpu.memory_space<vmem>>, vector<1x5x16xf32>
    %140 = vector.shape_cast %139 : vector<1x5x16xf32> to vector<5x16xf32>
    %cst_109 = arith.constant dense<0.000000e+00> : vector<5x256xf32>
    %141 = tpu.matmul %140, %138, %cst_109 {dimension_numbers = #tpu.dot_dimension_numbers<[1], [0], [0], [1], [0, 0, 1, 1], [], []>} : vector<5x16xf32>, vector<16x256xf32>, vector<5x256xf32> -> vector<5x256xf32>
    %142 = arith.addf %133, %141 : vector<5x256xf32>
    %c240_i32_110 = arith.constant 240 : i32
    %143 = tpu.dynamic_rotate %83 by %c240_i32_110 dim 1 : vector<16x256xf32>, i32 -> vector<16x256xf32>
    %c7_111 = arith.constant 7 : index
    %c0_112 = arith.constant 0 : index
    %c0_113 = arith.constant 0 : index
    %144 = vector.load %arg6[%c7_111, %c0_112, %c0_113] : memref<9x1x256xf32, #tpu.memory_space<vmem>>, vector<1x1x256xf32>
    %145 = vector.shape_cast %144 : vector<1x1x256xf32> to vector<1x256xf32>
    %146 = vector.broadcast %145 : vector<1x256xf32> to vector<16x256xf32>
    %147 = arith.mulf %143, %146 : vector<16x256xf32>
    %c7_114 = arith.constant 7 : index
    %c0_115 = arith.constant 0 : index
    %c0_116 = arith.constant 0 : index
    %148 = vector.load %arg4[%c7_114, %c0_115, %c0_116] : memref<9x5x16xf32, #tpu.memory_space<vmem>>, vector<1x5x16xf32>
    %149 = vector.shape_cast %148 : vector<1x5x16xf32> to vector<5x16xf32>
    %cst_117 = arith.constant dense<0.000000e+00> : vector<5x256xf32>
    %150 = tpu.matmul %149, %147, %cst_117 {dimension_numbers = #tpu.dot_dimension_numbers<[1], [0], [0], [1], [0, 0, 1, 1], [], []>} : vector<5x16xf32>, vector<16x256xf32>, vector<5x256xf32> -> vector<5x256xf32>
    %151 = arith.addf %142, %150 : vector<5x256xf32>
    %c239_i32_118 = arith.constant 239 : i32
    %152 = tpu.dynamic_rotate %83 by %c239_i32_118 dim 1 : vector<16x256xf32>, i32 -> vector<16x256xf32>
    %c8_119 = arith.constant 8 : index
    %c0_120 = arith.constant 0 : index
    %c0_121 = arith.constant 0 : index
    %153 = vector.load %arg6[%c8_119, %c0_120, %c0_121] : memref<9x1x256xf32, #tpu.memory_space<vmem>>, vector<1x1x256xf32>
    %154 = vector.shape_cast %153 : vector<1x1x256xf32> to vector<1x256xf32>
    %155 = vector.broadcast %154 : vector<1x256xf32> to vector<16x256xf32>
    %156 = arith.mulf %152, %155 : vector<16x256xf32>
    %c8_122 = arith.constant 8 : index
    %c0_123 = arith.constant 0 : index
    %c0_124 = arith.constant 0 : index
    %157 = vector.load %arg4[%c8_122, %c0_123, %c0_124] : memref<9x5x16xf32, #tpu.memory_space<vmem>>, vector<1x5x16xf32>
    %158 = vector.shape_cast %157 : vector<1x5x16xf32> to vector<5x16xf32>
    %cst_125 = arith.constant dense<0.000000e+00> : vector<5x256xf32>
    %159 = tpu.matmul %158, %156, %cst_125 {dimension_numbers = #tpu.dot_dimension_numbers<[1], [0], [0], [1], [0, 0, 1, 1], [], []>} : vector<5x16xf32>, vector<16x256xf32>, vector<5x256xf32> -> vector<5x256xf32>
    %160 = arith.addf %151, %159 : vector<5x256xf32>
    %c0_126 = arith.constant 0 : index
    %c0_127 = arith.constant 0 : index
    %161 = vector.load %arg5[%c0_126, %c0_127] : memref<5x1xf32, #tpu.memory_space<vmem>>, vector<5x1xf32>
    %162 = vector.broadcast %161 : vector<5x1xf32> to vector<5x256xf32>
    %163 = arith.addf %160, %162 : vector<5x256xf32>
    %c0_128 = arith.constant 0 : index
    %c0_129 = arith.constant 0 : index
    %c0_130 = arith.constant 0 : index
    %164 = vector.load %arg7[%c0_128, %c0_129, %c0_130] : memref<1x5x256xf32, #tpu.memory_space<vmem>>, vector<1x5x256xf32>
    %165 = vector.shape_cast %164 : vector<1x5x256xf32> to vector<5x256xf32>
    %166 = vector.shape_cast %163 : vector<5x256xf32> to vector<1x5x256xf32>
    tpu.vector_store %arg7[%c0_128, %c0_129, %c0_130], %166 {strides = array<i32>} : memref<1x5x256xf32, #tpu.memory_space<vmem>>, vector<1x5x256xf32>,
    return
  }
  func.func @transform_0(%arg0: i32) -> (i32, i32, i32) {
    %c0_i32 = arith.constant 0 : i32
    %c0_i32_0 = arith.constant 0 : i32
    %c0_i32_1 = arith.constant 0 : i32
    return %arg0, %c0_i32, %c0_i32_0 : i32, i32, i32
  }
  func.func @transform_1(%arg0: i32) -> (i32, i32, i32) {
    %c0_i32 = arith.constant 0 : i32
    %c0_i32_0 = arith.constant 0 : i32
    %c0_i32_1 = arith.constant 0 : i32
    %c0_i32_2 = arith.constant 0 : i32
    return %c0_i32, %c0_i32_0, %c0_i32_1 : i32, i32, i32
  }
  func.func @transform_2(%arg0: i32) -> (i32, i32) {
    %c0_i32 = arith.constant 0 : i32
    %c0_i32_0 = arith.constant 0 : i32
    %c0_i32_1 = arith.constant 0 : i32
    return %c0_i32, %c0_i32_0 : i32, i32
  }
  func.func @transform_3(%arg0: i32) -> (i32, i32, i32) {
    %c0_i32 = arith.constant 0 : i32
    %c0_i32_0 = arith.constant 0 : i32
    %c0_i32_1 = arith.constant 0 : i32
    %c0_i32_2 = arith.constant 0 : i32
    return %c0_i32, %c0_i32_0, %c0_i32_1 : i32, i32, i32
  }
  func.func @transform_4(%arg0: i32) -> (i32, i32) {
    %c0_i32 = arith.constant 0 : i32
    %c0_i32_0 = arith.constant 0 : i32
    %c0_i32_1 = arith.constant 0 : i32
    return %c0_i32, %c0_i32_0 : i32, i32
  }
  func.func @transform_5(%arg0: i32) -> (i32, i32, i32) {
    %c0_i32 = arith.constant 0 : i32
    %c0_i32_0 = arith.constant 0 : i32
    %c0_i32_1 = arith.constant 0 : i32
    %c0_i32_2 = arith.constant 0 : i32
    return %c0_i32, %c0_i32_0, %c0_i32_1 : i32, i32, i32
  }
  func.func @transform_6(%arg0: i32) -> (i32, i32, i32) {
    %c0_i32 = arith.constant 0 : i32
    %c0_i32_0 = arith.constant 0 : i32
    %c0_i32_1 = arith.constant 0 : i32
    return %arg0, %c0_i32, %c0_i32_0 : i32, i32, i32
  }
}

</mosaic_0001>

<llo_original>
// kernel: flow_occ.1
$region0: #{flow_occ.1}
  #allocation0 [shape = 'u32[]', space=smem, size = 0x4, offset = 0x4, fixed_abs, tag = 'smem constant byte address 0x4 - core index']
  #allocation1 [shape = 'u32[144,128]{1,0:T(1,128)}', space=vmem, size = 0x12000, scoped, tag = 'internal scratch']
  %s0 = inlined_call_operand.vmem [shape: f32[2,4,256], index: 0, kind: input, shape index: {}]
  %s1 = inlined_call_operand.vmem [shape: f32[9,16,4], index: 1, kind: input, shape index: {}]
  %s2 = inlined_call_operand.vmem [shape: f32[16,1], index: 2, kind: input, shape index: {}]
  %s3 = inlined_call_operand.vmem [shape: f32[9,5,16], index: 3, kind: input, shape index: {}]
  %s4 = inlined_call_operand.vmem [shape: f32[5,1], index: 4, kind: input, shape index: {}]
  %s5 = inlined_call_operand.vmem [shape: f32[9,1,256], index: 5, kind: input, shape index: {}]
  %s6 = inlined_call_operand.vmem [shape: f32[2,5,256], index: 6, kind: output, shape index: {}]
  %s7 = sld [smem:[#allocation0]]
  $region57: #{flow_occ.1} parent=0
    _
  %s9 = ssub.s32 1, %s7
  %s10 = scalar_select 0, %s9, %s7
  loop: start=0, step=1, limit=4
  $region2: #{flow_occ.1} parent=0 // loop_pre_header
    _
  $region3: #{flow_occ.1} parent=0 // loop_header
    %s12 = sphi 0, %s16
    %p13 = scmp.ge.s32.totalorder %s12, 4
    %s22 = sphi 0, %s24
    %s25 = sphi 0, %s22
    %s26 = sphi 0, %s25
    %s42 = sphi 0, %s26
    %s46 = sphi 0, %s46
    %s48 = sphi 0, %s46
    %s49 = sphi 0, %s48
    %s63 = sphi 0, %s49
    %s67 = sphi 0, %s67
    %s69 = sphi 0, %s67
    %s70 = sphi 0, %s69
    %s84 = sphi 0, %s70
    %s88 = sphi 0, %s88
    %s90 = sphi 0, %s88
    %s91 = sphi 0, %s90
    %s105 = sphi 0, %s91
    %s109 = sphi 0, %s109
    %s111 = sphi 0, %s109
    %s112 = sphi 0, %s111
    %s126 = sphi 0, %s112
    %s130 = sphi 0, %s130
    %s132 = sphi 0, %s130
    %s133 = sphi 0, %s132
    %s147 = sphi 0, %s133
    %s153 = sphi 0, %s155
    %s156 = sphi 0, %s153
    %s157 = sphi 0, %s156
    %s173 = sphi 0, %s157
  $region4: #{flow_occ.1} parent=0 // loop_header_branch
    %15 = sbr.rel (%p13) target = $region8
  $region5: #{flow_occ.1} parent=0 // loop_body
    %s17 = ssub.s32 %s12, 1
    %s18 = ssub.s32 %s12, 2
    %s19 = sadd.s32 %s12, 1
    %s20 = ssub.s32 %s12, %s19
    %p21 = scmp.eq.s32.totalorder %s20, 0
    %s23 = sadd.s32 %s22, 1
    %s24 = scalar_select %p21, %s22, %s23
    %p27 = pneg %p21
    %p28 = scmp.eq.s32.totalorder %s12, 1
    %p29 = por %p27, %p28
    %p30 = scmp.ne.s32.totalorder %s22, %s25
    %p31 = scmp.eq.s32.totalorder %s12, 0
    %p32 = por %p30, %p31
    %p33 = scmp.ne.s32.totalorder %s22, %s25
    %p34 = scmp.eq.s32.totalorder %s17, 1
    %p35 = por %p33, %p34
    %p36 = scmp.ne.s32.totalorder %s25, %s26
    %p37 = scmp.eq.s32.totalorder %s17, 0
    %p38 = por %p36, %p37
    %p39 = scmp.ne.s32.totalorder %s25, %s26
    %p40 = scmp.eq.s32.totalorder %s18, 1
    %p41 = por %p39, %p40
    %p43 = scmp.ne.s32.totalorder %s26, %s42
    %p44 = scmp.eq.s32.totalorder %s18, 0
    %p45 = por %p43, %p44
    %s47 = sadd.s32 %s46, 1
    %p50 = scmp.eq.s32.totalorder %s12, 1
    %p51 = scmp.ne.s32.totalorder %s46, %s48
    %p52 = scmp.eq.s32.totalorder %s12, 0
    %p53 = por %p51, %p52
    %p54 = scmp.ne.s32.totalorder %s46, %s48
    %p55 = scmp.eq.s32.totalorder %s17, 1
    %p56 = por %p54, %p55
    %p57 = scmp.ne.s32.totalorder %s48, %s49
    %p58 = scmp.eq.s32.totalorder %s17, 0
    %p59 = por %p57, %p58
    %p60 = scmp.ne.s32.totalorder %s48, %s49
    %p61 = scmp.eq.s32.totalorder %s18, 1
    %p62 = por %p60, %p61
    %p64 = scmp.ne.s32.totalorder %s49, %s63
    %p65 = scmp.eq.s32.totalorder %s18, 0
    %p66 = por %p64, %p65
    %s68 = sadd.s32 %s67, 1
    %p71 = scmp.eq.s32.totalorder %s12, 1
    %p72 = scmp.ne.s32.totalorder %s67, %s69
    %p73 = scmp.eq.s32.totalorder %s12, 0
    %p74 = por %p72, %p73
    %p75 = scmp.ne.s32.totalorder %s67, %s69
    %p76 = scmp.eq.s32.totalorder %s17, 1
    %p77 = por %p75, %p76
    %p78 = scmp.ne.s32.totalorder %s69, %s70
    %p79 = scmp.eq.s32.totalorder %s17, 0
    %p80 = por %p78, %p79
    %p81 = scmp.ne.s32.totalorder %s69, %s70
    %p82 = scmp.eq.s32.totalorder %s18, 1
    %p83 = por %p81, %p82
    %p85 = scmp.ne.s32.totalorder %s70, %s84
    %p86 = scmp.eq.s32.totalorder %s18, 0
    %p87 = por %p85, %p86
    %s89 = sadd.s32 %s88, 1
    %p92 = scmp.eq.s32.totalorder %s12, 1
    %p93 = scmp.ne.s32.totalorder %s88, %s90
    %p94 = scmp.eq.s32.totalorder %s12, 0
    %p95 = por %p93, %p94
    %p96 = scmp.ne.s32.totalorder %s88, %s90
    %p97 = scmp.eq.s32.totalorder %s17, 1
    %p98 = por %p96, %p97
    %p99 = scmp.ne.s32.totalorder %s90, %s91
    %p100 = scmp.eq.s32.totalorder %s17, 0
    %p101 = por %p99, %p100
    %p102 = scmp.ne.s32.totalorder %s90, %s91
    %p103 = scmp.eq.s32.totalorder %s18, 1
    %p104 = por %p102, %p103
    %p106 = scmp.ne.s32.totalorder %s91, %s105
    %p107 = scmp.eq.s32.totalorder %s18, 0
    %p108 = por %p106, %p107
    %s110 = sadd.s32 %s109, 1
    %p113 = scmp.eq.s32.totalorder %s12, 1
    %p114 = scmp.ne.s32.totalorder %s109, %s111
    %p115 = scmp.eq.s32.totalorder %s12, 0
    %p116 = por %p114, %p115
    %p117 = scmp.ne.s32.totalorder %s109, %s111
    %p118 = scmp.eq.s32.totalorder %s17, 1
    %p119 = por %p117, %p118
    %p120 = scmp.ne.s32.totalorder %s111, %s112
    %p121 = scmp.eq.s32.totalorder %s17, 0
    %p122 = por %p120, %p121
    %p123 = scmp.ne.s32.totalorder %s111, %s112
    %p124 = scmp.eq.s32.totalorder %s18, 1
    %p125 = por %p123, %p124
    %p127 = scmp.ne.s32.totalorder %s112, %s126
    %p128 = scmp.eq.s32.totalorder %s18, 0
    %p129 = por %p127, %p128
    %s131 = sadd.s32 %s130, 1
    %p134 = scmp.eq.s32.totalorder %s12, 1
    %p135 = scmp.ne.s32.totalorder %s130, %s132
    %p136 = scmp.eq.s32.totalorder %s12, 0
    %p137 = por %p135, %p136
    %p138 = scmp.ne.s32.totalorder %s130, %s132
    %p139 = scmp.eq.s32.totalorder %s17, 1
    %p140 = por %p138, %p139
    %p141 = scmp.ne.s32.totalorder %s132, %s133
    %p142 = scmp.eq.s32.totalorder %s17, 0
    %p143 = por %p141, %p142
    %p144 = scmp.ne.s32.totalorder %s132, %s133
    %p145 = scmp.eq.s32.totalorder %s18, 1
    %p146 = por %p144, %p145
    %p148 = scmp.ne.s32.totalorder %s133, %s147
    %p149 = scmp.eq.s32.totalorder %s18, 0
    %p150 = por %p148, %p149
    %s151 = ssub.s32 %s12, %s19
    %p152 = scmp.eq.s32.totalorder %s151, 0
    %s154 = sadd.s32 %s153, 1
    %s155 = scalar_select %p152, %s153, %s154
    %p158 = pneg %p152
    %p159 = scmp.eq.s32.totalorder %s12, 1
    %p160 = por %p158, %p159
    %p161 = scmp.ne.s32.totalorder %s153, %s156
    %p162 = scmp.eq.s32.totalorder %s12, 0
    %p163 = por %p161, %p162
    %p164 = scmp.ne.s32.totalorder %s153, %s156
    %p165 = scmp.eq.s32.totalorder %s17, 1
    %p166 = por %p164, %p165
    %p167 = scmp.ne.s32.totalorder %s156, %s157
    %p168 = scmp.eq.s32.totalorder %s17, 0
    %p169 = por %p167, %p168
    %p170 = scmp.ne.s32.totalorder %s156, %s157
    %p171 = scmp.eq.s32.totalorder %s18, 1
    %p172 = por %p170, %p171
    %p174 = scmp.ne.s32.totalorder %s157, %s173
    %p175 = scmp.eq.s32.totalorder %s18, 0
    %p176 = por %p174, %p175
    %p177 = scmp.le.s32.totalorder 1, %s12
    %p178 = scmp.lt.s32.totalorder %s12, 3
    %p179 = pnand %p177, %p178
    %p180 = pneg %p179
    // Predicated region
    $region9: #{flow_occ.1} parent=5 // pred_check
      _
    $region10: #{flow_occ.1} parent=5 // pred_check_branch
      %182 = sbr.rel (%p179) target = $region12
    $region11: #{flow_occ.1} parent=5 // pred_region
      %s183 = ssub.s32 %s12, 1
      // Predicated region
      $region13: #{flow_occ.1} parent=11 // pred_check
        %p184 = pneg %p59
      $region14: #{flow_occ.1} parent=11 // pred_check_branch
        %186 = sbr.rel (%p184) target = $region16
      $region15: #{flow_occ.1} parent=11 // pred_region
        _
      $region16: #{flow_occ.1} parent=11 // pred_fallthru
        _
      // Predicated region
      $region17: #{flow_occ.1} parent=11 // pred_check
        %p187 = pneg %p80
      $region18: #{flow_occ.1} parent=11 // pred_check_branch
        %189 = sbr.rel (%p187) target = $region20
      $region19: #{flow_occ.1} parent=11 // pred_region
        _
      $region20: #{flow_occ.1} parent=11 // pred_fallthru
        _
      // Predicated region
      $region21: #{flow_occ.1} parent=11 // pred_check
        %p190 = pneg %p101
      $region22: #{flow_occ.1} parent=11 // pred_check_branch
        %192 = sbr.rel (%p190) target = $region24
      $region23: #{flow_occ.1} parent=11 // pred_region
        _
      $region24: #{flow_occ.1} parent=11 // pred_fallthru
        _
      // Predicated region
      $region25: #{flow_occ.1} parent=11 // pred_check
        %p193 = pneg %p122
      $region26: #{flow_occ.1} parent=11 // pred_check_branch
        %195 = sbr.rel (%p193) target = $region28
      $region27: #{flow_occ.1} parent=11 // pred_region
        _
      $region28: #{flow_occ.1} parent=11 // pred_fallthru
        _
      // Predicated region
      $region29: #{flow_occ.1} parent=11 // pred_check
        %p196 = pneg %p143
      $region30: #{flow_occ.1} parent=11 // pred_check_branch
        %198 = sbr.rel (%p196) target = $region32
      $region31: #{flow_occ.1} parent=11 // pred_region
        _
      $region32: #{flow_occ.1} parent=11 // pred_fallthru
        _
    $region12: #{flow_occ.1} parent=5 // pred_fallthru
      _
    %p199 = scmp.lt.s32.totalorder %s12, 2
    // Predicated region
    $region33: #{flow_occ.1} parent=5 // pred_check
      %p200 = pneg %p199
    $region34: #{flow_occ.1} parent=5 // pred_check_branch
      %202 = sbr.rel (%p200) target = $region36
    $region35: #{flow_occ.1} parent=5 // pred_region
      // Predicated region
      $region37: #{flow_occ.1} parent=35 // pred_check
        %p203 = pneg %p32
      $region38: #{flow_occ.1} parent=35 // pred_check_branch
        %205 = sbr.rel (%p203) target = $region40
      $region39: #{flow_occ.1} parent=35 // pred_region
        %p206 = scmp.lt.s32.totalorder %s12, 1
        %s207 = scalar_select %p206, %s12, 1
        %s208 = smul.addr %s207, 2
        %s209 = smul.addr %s208, 4
        %s210 = scalar_lea.vmem %s0, %s209
      $region40: #{flow_occ.1} parent=35 // pred_fallthru
        _
    $region36: #{flow_occ.1} parent=5 // pred_fallthru
      _
    %p211 = scmp.le.s32.totalorder 1, %s12
    %p212 = scmp.lt.s32.totalorder %s12, 3
    %p213 = pnand %p211, %p212
    %p214 = pneg %p213
    // Predicated region
    $region41: #{flow_occ.1} parent=5 // pred_check
      _
    $region42: #{flow_occ.1} parent=5 // pred_check_branch
      %216 = sbr.rel (%p213) target = $region44
    $region43: #{flow_occ.1} parent=5 // pred_region
      %s217 = ssub.s32 %s12, 1
      %p218 = scmp.lt.s32.totalorder %s17, 1
      %s219 = scalar_select %p218, %s17, 1
      %s220 = smul.addr %s219, 2
      %s221 = smul.addr %s220, 4
      %s222 = scalar_lea.vmem %s0, %s221
      %p223 = pneg %p38
      %p224 = pneg %p35
      %p225 = pneg %p59
      %p226 = pneg %p56
      %p227 = pneg %p80
      %p228 = pneg %p77
      %p229 = pneg %p101
      %p230 = pneg %p98
      %p231 = pneg %p122
      %p232 = pneg %p119
      %p233 = pneg %p143
      %p234 = pneg %p140
      %p235 = pneg %p169
      %p236 = pneg %p166
      %p237 = scmp.lt.s32.totalorder %s17, 1
      %s238 = scalar_select %p237, %s17, 1
      %s239 = smul.addr %s238, 2
      %s240 = smul.addr %s239, 8
      %s241 = scalar_lea.vmem %s6, %s240
      %p242 = scmp.lt.s32.totalorder %s17, 1
      %s243 = scalar_select %p242, %s17, 1
      %s244 = smul.addr %s243, 2
      %s245 = smul.addr %s244, 4
      %s246 = scalar_lea.vmem %s0, %s245
      %p247 = scmp.lt.s32.totalorder %s17, 1
      %s248 = scalar_select %p247, %s17, 1
      %s249 = smul.addr %s248, 2
      %s250 = smul.addr %s249, 8
      %s251 = scalar_lea.vmem %s6, %s250
      %v252 = vld [vmem:[%s246] sm:$0xff]
      %v254 = vcombine.high %v252, %v252
      %256 = vrot.lane.b32.xlu0 %v252, 17
      %v257 = vpop.permute.xlu0 %256
      %258 = vrot.lane.b32.xlu0 %v254, 17
      %v259 = vpop.permute.xlu0 %258
      %v260 = vlaneseq
      %v261 = vand.u32 %v260, 127
      %vm262 = vcmp.lt.s32.totalorder %v261, 17
      %v263 = vsel %vm262, %v257, %v259
      %v264 = vsel %vm262, %v259, %v257
      %v265 = vld [vmem:[%s5] sm:$0x3]
      %v267 = vlaneseq
      %v268 = vshrl.u32 %v267, 7
      %v269 = vsub.s32 0, %v268
      %v270 = vrot.slane %v265, %v269
      %v271 = vlaneseq
      %v272 = vshrl.u32 %v271, 7
      %v273 = vsub.s32 1, %v272
      %v274 = vrot.slane %v265, %v273
      %v277 = vmul.f32 %v264, %v270
      %v278 = vmul.f32 %v263, %v274
      %v279 = vld [vmem:[%s1] sm:$0xff]
      %v280 = vld [vmem:[%s1 + $0x8] sm:$0xff]
      %281 = vrot.lane.b32.xlu0 %v252, 16
      %v282 = vpop.permute.xlu0 %281
      %283 = vrot.lane.b32.xlu0 %v254, 16
      %v284 = vpop.permute.xlu0 %283
      %vm285 = vcmp.lt.s32.totalorder %v261, 16
      %v286 = vsel %vm285, %v282, %v284
      %v287 = vsel %vm285, %v284, %v282
      %s288 = scalar_lea.vmem %s5, 2
      %v289 = vld [vmem:[%s288] sm:$0x3]
      %v291 = vlaneseq
      %v292 = vshrl.u32 %v291, 7
      %v293 = vsub.s32 0, %v292
      %v294 = vrot.slane %v289, %v293
      %v295 = vlaneseq
      %v296 = vshrl.u32 %v295, 7
      %v297 = vsub.s32 1, %v296
      %v298 = vrot.slane %v289, %v297
      %v301 = vmul.f32 %v287, %v294
      %v302 = vmul.f32 %v286, %v298
      %s303 = scalar_lea.vmem %s1, 16
      %v304 = vld [vmem:[%s303] sm:$0xff]
      %v305 = vld [vmem:[%s303 + $0x8] sm:$0xff]
      %vm306 = vcmask 31744
      %v308 = vsel %vm306, %v304, 0
      %v311 = vsel %vm306, %v305, 0
      %vm313 = vcmask 1043456
      %v315 = vsel %vm313, %v301, 0
      %v318 = vsel %vm313, %v302, 0
      %320 = vmatprep.subr.mxu0 %v318
      %321 = vmatpush1.msra.mxu0 %v315
      %322 = vmatprep.subr.mxu0 0.0
      %323 = vmatpush1.msra.mxu0 0.0
      %324 = vmatprep.subr.mxu0 0.0
      %325 = vmatpush1.msra.mxu0 0.0
      %326 = vmatprep.subr.mxu0 0.0
      %327 = vmatpush1.msra.mxu0 0.0
      %328 = vmatprep.subr.mxu0 0.0
      %329 = vmatpush1.msra.mxu0 0.0
      %330 = vmatprep.subr.mxu0 0.0
      %331 = vmatpush1.msra.mxu0 0.0
      %332 = vmatprep.subr.mxu0 0.0
      %333 = vmatpush1.msra.mxu0 0.0
      %334 = vmatprep.subr.mxu0 0.0
      %335 = vmatpush1.msra.mxu0 0.0
      %336 = vmatprep.subr.mxu0 0.0
      %337 = vmatpush1.msra.mxu0 0.0
      %338 = vmatprep.subr.mxu0 0.0
      %339 = vmatpush1.msra.mxu0 0.0
      %340 = vmatprep.subr.mxu0 0.0
      %341 = vmatpush1.msra.mxu0 0.0
      %342 = vmatprep.subr.mxu0 0.0
      %343 = vmatpush1.msra.mxu0 0.0
      %344 = vmatprep.subr.mxu0 0.0
      %345 = vmatpush1.msra.mxu0 0.0
      %346 = vmatprep.subr.mxu0 0.0
      %347 = vmatpush1.msra.mxu0 0.0
      %348 = vmatprep.subr.mxu0 0.0
      %349 = vmatpush1.msra.mxu0 0.0
      %350 = vmatprep.subr.mxu0 0.0
      %351 = vmatpush1.msra.mxu0 0.0
      %352 = vmatprep.subr.mxu0 0.0
      %353 = vmatpush1.msra.mxu0 0.0
      %354 = vmatprep.subr.mxu0 0.0
      %355 = vmatpush1.msra.mxu0 0.0
      %356 = vmatprep.subr.mxu0 0.0
      %357 = vmatpush1.msra.mxu0 0.0
      %358 = vmatprep.subr.mxu0 0.0
      %359 = vmatpush1.msra.mxu0 0.0
      %360 = vmatprep.subr.mxu0 0.0
      %361 = vmatpush1.msra.mxu0 0.0
      %362 = vmatprep.subr.mxu0 0.0
      %363 = vmatpush1.msra.mxu0 0.0
      %364 = vmatprep.subr.mxu0 0.0
      %365 = vmatpush1.msra.mxu0 0.0
      %366 = vmatprep.subr.mxu0 0.0
      %367 = vmatpush1.msra.mxu0 0.0
      %368 = vmatprep.subr.mxu0 0.0
      %369 = vmatpush1.msra.mxu0 0.0
      %370 = vmatprep.subr.mxu0 0.0
      %371 = vmatpush1.msra.mxu0 0.0
      %372 = vmatprep.subr.mxu0 0.0
      %373 = vmatpush1.msra.mxu0 0.0
      %374 = vmatprep.subr.mxu0 0.0
      %375 = vmatpush1.msra.mxu0 0.0
      %376 = vmatprep.subr.mxu0 0.0
      %377 = vmatpush1.msra.mxu0 0.0
      %378 = vmatprep.subr.mxu0 0.0
      %379 = vmatpush1.msra.mxu0 0.0
      %380 = vmatprep.subr.mxu0 0.0
      %381 = vmatpush1.msra.mxu0 0.0
      %382 = vmatprep.subr.mxu0 0.0
      %383 = vmatpush1.msra.mxu0 0.0
      %384 = vmatprep.mubr.f32.mxu0 0.0
      %385 = vmatmul.mubr.f32.gmra.mrb[0].mxu0 %v308
      %v386 = vpop.f32.mrb[0].mxu0
      %v387 = vadd.f32 0.0, %v386
      %v388 = vpop.f32.mrb[0].mxu0
      %v389 = vadd.f32 0.0, %v388
      %390 = vmatprep.mubr.f32.mxu0 0.0
      %391 = vmatmul.mubr.f32.gmra.mrb[0].mxu0 %v311
      %v392 = vpop.f32.mrb[0].mxu0
      %v393 = vadd.f32 0.0, %v392
      %v394 = vpop.f32.mrb[0].mxu0
      %v395 = vadd.f32 0.0, %v394
      %396 = vdwg.mxu0
      %v398 = vsel %vm306, %v279, 0
      %v401 = vsel %vm306, %v280, 0
      %v404 = vsel %vm313, %v277, 0
      %v407 = vsel %vm313, %v278, 0
      %409 = vmatprep.subr.mxu0 %v407
      %410 = vmatpush1.msra.mxu0 %v404
      %411 = vmatprep.subr.mxu0 0.0
      %412 = vmatpush1.msra.mxu0 0.0
      %413 = vmatprep.subr.mxu0 0.0
      %414 = vmatpush1.msra.mxu0 0.0
      %415 = vmatprep.subr.mxu0 0.0
      %416 = vmatpush1.msra.mxu0 0.0
      %417 = vmatprep.subr.mxu0 0.0
      %418 = vmatpush1.msra.mxu0 0.0
      %419 = vmatprep.subr.mxu0 0.0
      %420 = vmatpush1.msra.mxu0 0.0
      %421 = vmatprep.subr.mxu0 0.0
      %422 = vmatpush1.msra.mxu0 0.0
      %423 = vmatprep.subr.mxu0 0.0
      %424 = vmatpush1.msra.mxu0 0.0
      %425 = vmatprep.subr.mxu0 0.0
      %426 = vmatpush1.msra.mxu0 0.0
      %427 = vmatprep.subr.mxu0 0.0
      %428 = vmatpush1.msra.mxu0 0.0
      %429 = vmatprep.subr.mxu0 0.0
      %430 = vmatpush1.msra.mxu0 0.0
      %431 = vmatprep.subr.mxu0 0.0
      %432 = vmatpush1.msra.mxu0 0.0
      %433 = vmatprep.subr.mxu0 0.0
      %434 = vmatpush1.msra.mxu0 0.0
      %435 = vmatprep.subr.mxu0 0.0
      %436 = vmatpush1.msra.mxu0 0.0
      %437 = vmatprep.subr.mxu0 0.0
      %438 = vmatpush1.msra.mxu0 0.0
      %439 = vmatprep.subr.mxu0 0.0
      %440 = vmatpush1.msra.mxu0 0.0
      %441 = vmatprep.subr.mxu0 0.0
      %442 = vmatpush1.msra.mxu0 0.0
      %443 = vmatprep.subr.mxu0 0.0
      %444 = vmatpush1.msra.mxu0 0.0
      %445 = vmatprep.subr.mxu0 0.0
      %446 = vmatpush1.msra.mxu0 0.0
      %447 = vmatprep.subr.mxu0 0.0
      %448 = vmatpush1.msra.mxu0 0.0
      %449 = vmatprep.subr.mxu0 0.0
      %450 = vmatpush1.msra.mxu0 0.0
      %451 = vmatprep.subr.mxu0 0.0
      %452 = vmatpush1.msra.mxu0 0.0
      %453 = vmatprep.subr.mxu0 0.0
      %454 = vmatpush1.msra.mxu0 0.0
      %455 = vmatprep.subr.mxu0 0.0
      %456 = vmatpush1.msra.mxu0 0.0
      %457 = vmatprep.subr.mxu0 0.0
      %458 = vmatpush1.msra.mxu0 0.0
      %459 = vmatprep.subr.mxu0 0.0
      %460 = vmatpush1.msra.mxu0 0.0
      %461 = vmatprep.subr.mxu0 0.0
      %462 = vmatpush1.msra.mxu0 0.0
      %463 = vmatprep.subr.mxu0 0.0
      %464 = vmatpush1.msra.mxu0 0.0
      %465 = vmatprep.subr.mxu0 0.0
      %466 = vmatpush1.msra.mxu0 0.0
      %467 = vmatprep.subr.mxu0 0.0
      %468 = vmatpush1.msra.mxu0 0.0
      %469 = vmatprep.subr.mxu0 0.0
      %470 = vmatpush1.msra.mxu0 0.0
      %471 = vmatprep.subr.mxu0 0.0
      %472 = vmatpush1.msra.mxu0 0.0
      %473 = vmatprep.mubr.f32.mxu0 0.0
      %474 = vmatmul.mubr.f32.gmra.mrb[0].mxu0 %v398
      %v475 = vpop.f32.mrb[0].mxu0
      %v476 = vadd.f32 %v387, %v475
      %v477 = vpop.f32.mrb[0].mxu0
      %v478 = vadd.f32 %v389, %v477
      %479 = vmatprep.mubr.f32.mxu0 0.0
      %480 = vmatmul.mubr.f32.gmra.mrb[0].mxu0 %v401
      %v481 = vpop.f32.mrb[0].mxu0
      %v482 = vadd.f32 %v393, %v481
      %v483 = vpop.f32.mrb[0].mxu0
      %v484 = vadd.f32 %v395, %v483
      %485 = vdwg.mxu0
      %486 = vrot.lane.b32.xlu0 %v252, 15
      %v487 = vpop.permute.xlu0 %486
      %488 = vrot.lane.b32.xlu0 %v254, 15
      %v489 = vpop.permute.xlu0 %488
      %vm490 = vcmp.lt.s32.totalorder %v261, 15
      %v491 = vsel %vm490, %v487, %v489
      %v492 = vsel %vm490, %v489, %v487
      %s493 = scalar_lea.vmem %s5, 4
      %v494 = vld [vmem:[%s493] sm:$0x3]
      %v496 = vlaneseq
      %v497 = vshrl.u32 %v496, 7
      %v498 = vsub.s32 0, %v497
      %v499 = vrot.slane %v494, %v498
      %v500 = vlaneseq
      %v501 = vshrl.u32 %v500, 7
      %v502 = vsub.s32 1, %v501
      %v503 = vrot.slane %v494, %v502
      %v506 = vmul.f32 %v492, %v499
      %v507 = vmul.f32 %v491, %v503
      %s508 = scalar_lea.vmem %s1, 32
      %v509 = vld [vmem:[%s508] sm:$0xff]
      %v510 = vld [vmem:[%s508 + $0x8] sm:$0xff]
      %v512 = vsel %vm306, %v509, 0
      %v515 = vsel %vm306, %v510, 0
      %v518 = vsel %vm313, %v506, 0
      %v521 = vsel %vm313, %v507, 0
      %523 = vmatprep.subr.mxu0 %v521
      %524 = vmatpush1.msra.mxu0 %v518
      %525 = vmatprep.subr.mxu0 0.0
      %526 = vmatpush1.msra.mxu0 0.0
      %527 = vmatprep.subr.mxu0 0.0
      %528 = vmatpush1.msra.mxu0 0.0
      %529 = vmatprep.subr.mxu0 0.0
      %530 = vmatpush1.msra.mxu0 0.0
      %531 = vmatprep.subr.mxu0 0.0
      %532 = vmatpush1.msra.mxu0 0.0
      %533 = vmatprep.subr.mxu0 0.0
      %534 = vmatpush1.msra.mxu0 0.0
      %535 = vmatprep.subr.mxu0 0.0
      %536 = vmatpush1.msra.mxu0 0.0
      %537 = vmatprep.subr.mxu0 0.0
      %538 = vmatpush1.msra.mxu0 0.0
      %539 = vmatprep.subr.mxu0 0.0
      %540 = vmatpush1.msra.mxu0 0.0
      %541 = vmatprep.subr.mxu0 0.0
      %542 = vmatpush1.msra.mxu0 0.0
      %543 = vmatprep.subr.mxu0 0.0
      %544 = vmatpush1.msra.mxu0 0.0
      %545 = vmatprep.subr.mxu0 0.0
      %546 = vmatpush1.msra.mxu0 0.0
      %547 = vmatprep.subr.mxu0 0.0
      %548 = vmatpush1.msra.mxu0 0.0
      %549 = vmatprep.subr.mxu0 0.0
      %550 = vmatpush1.msra.mxu0 0.0
      %551 = vmatprep.subr.mxu0 0.0
      %552 = vmatpush1.msra.mxu0 0.0
      %553 = vmatprep.subr.mxu0 0.0
      %554 = vmatpush1.msra.mxu0 0.0
      %555 = vmatprep.subr.mxu0 0.0
      %556 = vmatpush1.msra.mxu0 0.0
      %557 = vmatprep.subr.mxu0 0.0
      %558 = vmatpush1.msra.mxu0 0.0
      %559 = vmatprep.subr.mxu0 0.0
      %560 = vmatpush1.msra.mxu0 0.0
      %561 = vmatprep.subr.mxu0 0.0
      %562 = vmatpush1.msra.mxu0 0.0
      %563 = vmatprep.subr.mxu0 0.0
      %564 = vmatpush1.msra.mxu0 0.0
      %565 = vmatprep.subr.mxu0 0.0
      %566 = vmatpush1.msra.mxu0 0.0
      %567 = vmatprep.subr.mxu0 0.0
      %568 = vmatpush1.msra.mxu0 0.0
      %569 = vmatprep.subr.mxu0 0.0
      %570 = vmatpush1.msra.mxu0 0.0
      %571 = vmatprep.subr.mxu0 0.0
      %572 = vmatpush1.msra.mxu0 0.0
      %573 = vmatprep.subr.mxu0 0.0
      %574 = vmatpush1.msra.mxu0 0.0
      %575 = vmatprep.subr.mxu0 0.0
      %576 = vmatpush1.msra.mxu0 0.0
      %577 = vmatprep.subr.mxu0 0.0
      %578 = vmatpush1.msra.mxu0 0.0
      %579 = vmatprep.subr.mxu0 0.0
      %580 = vmatpush1.msra.mxu0 0.0
      %581 = vmatprep.subr.mxu0 0.0
      %582 = vmatpush1.msra.mxu0 0.0
      %583 = vmatprep.subr.mxu0 0.0
      %584 = vmatpush1.msra.mxu0 0.0
      %585 = vmatprep.subr.mxu0 0.0
      %586 = vmatpush1.msra.mxu0 0.0
      %587 = vmatprep.mubr.f32.mxu0 0.0
      %588 = vmatmul.mubr.f32.gmra.mrb[0].mxu0 %v512
      %v589 = vpop.f32.mrb[0].mxu0
      %v590 = vadd.f32 0.0, %v589
      %v591 = vpop.f32.mrb[0].mxu0
      %v592 = vadd.f32 0.0, %v591
      %593 = vmatprep.mubr.f32.mxu0 0.0
      %594 = vmatmul.mubr.f32.gmra.mrb[0].mxu0 %v515
      %v595 = vpop.f32.mrb[0].mxu0
      %v596 = vadd.f32 0.0, %v595
      %v597 = vpop.f32.mrb[0].mxu0
      %v598 = vadd.f32 0.0, %v597
      %599 = vdwg.mxu0
      %v600 = vadd.f32 %v476, %v590
      %v601 = vadd.f32 %v478, %v592
      %v602 = vadd.f32 %v482, %v596
      %v603 = vadd.f32 %v484, %v598
      %604 = vrot.lane.b32.xlu0 %v252, 1
      %v605 = vpop.permute.xlu0 %604
      %606 = vrot.lane.b32.xlu0 %v254, 1
      %v607 = vpop.permute.xlu0 %606
      %vm608 = vcmp.lt.s32.totalorder %v261, 1
      %v609 = vsel %vm608, %v605, %v607
      %v610 = vsel %vm608, %v607, %v605
      %s611 = scalar_lea.vmem %s5, 6
      %v612 = vld [vmem:[%s611] sm:$0x3]
      %v614 = vlaneseq
      %v615 = vshrl.u32 %v614, 7
      %v616 = vsub.s32 0, %v615
      %v617 = vrot.slane %v612, %v616
      %v618 = vlaneseq
      %v619 = vshrl.u32 %v618, 7
      %v620 = vsub.s32 1, %v619
      %v621 = vrot.slane %v612, %v620
      %v624 = vmul.f32 %v610, %v617
      %v625 = vmul.f32 %v609, %v621
      %s626 = scalar_lea.vmem %s1, 48
      %v627 = vld [vmem:[%s626] sm:$0xff]
      %v628 = vld [vmem:[%s626 + $0x8] sm:$0xff]
      %v630 = vsel %vm306, %v627, 0
      %v633 = vsel %vm306, %v628, 0
      %v636 = vsel %vm313, %v624, 0
      %v639 = vsel %vm313, %v625, 0
      %641 = vmatprep.subr.mxu0 %v639
      %642 = vmatpush1.msra.mxu0 %v636
      %643 = vmatprep.subr.mxu0 0.0
      %644 = vmatpush1.msra.mxu0 0.0
      %645 = vmatprep.subr.mxu0 0.0
      %646 = vmatpush1.msra.mxu0 0.0
      %647 = vmatprep.subr.mxu0 0.0
      %648 = vmatpush1.msra.mxu0 0.0
      %649 = vmatprep.subr.mxu0 0.0
      %650 = vmatpush1.msra.mxu0 0.0
      %651 = vmatprep.subr.mxu0 0.0
      %652 = vmatpush1.msra.mxu0 0.0
      %653 = vmatprep.subr.mxu0 0.0
      %654 = vmatpush1.msra.mxu0 0.0
      %655 = vmatprep.subr.mxu0 0.0
      %656 = vmatpush1.msra.mxu0 0.0
      %657 = vmatprep.subr.mxu0 0.0
      %658 = vmatpush1.msra.mxu0 0.0
      %659 = vmatprep.subr.mxu0 0.0
      %660 = vmatpush1.msra.mxu0 0.0
      %661 = vmatprep.subr.mxu0 0.0
      %662 = vmatpush1.msra.mxu0 0.0
      %663 = vmatprep.subr.mxu0 0.0
      %664 = vmatpush1.msra.mxu0 0.0
      %665 = vmatprep.subr.mxu0 0.0
      %666 = vmatpush1.msra.mxu0 0.0
      %667 = vmatprep.subr.mxu0 0.0
      %668 = vmatpush1.msra.mxu0 0.0
      %669 = vmatprep.subr.mxu0 0.0
      %670 = vmatpush1.msra.mxu0 0.0
      %671 = vmatprep.subr.mxu0 0.0
      %672 = vmatpush1.msra.mxu0 0.0
      %673 = vmatprep.subr.mxu0 0.0
      %674 = vmatpush1.msra.mxu0 0.0
      %675 = vmatprep.subr.mxu0 0.0
      %676 = vmatpush1.msra.mxu0 0.0
      %677 = vmatprep.subr.mxu0 0.0
      %678 = vmatpush1.msra.mxu0 0.0
      %679 = vmatprep.subr.mxu0 0.0
      %680 = vmatpush1.msra.mxu0 0.0
      %681 = vmatprep.subr.mxu0 0.0
      %682 = vmatpush1.msra.mxu0 0.0
      %683 = vmatprep.subr.mxu0 0.0
      %684 = vmatpush1.msra.mxu0 0.0
      %685 = vmatprep.subr.mxu0 0.0
      %686 = vmatpush1.msra.mxu0 0.0
      %687 = vmatprep.subr.mxu0 0.0
      %688 = vmatpush1.msra.mxu0 0.0
      %689 = vmatprep.subr.mxu0 0.0
      %690 = vmatpush1.msra.mxu0 0.0
      %691 = vmatprep.subr.mxu0 0.0
      %692 = vmatpush1.msra.mxu0 0.0
      %693 = vmatprep.subr.mxu0 0.0
      %694 = vmatpush1.msra.mxu0 0.0
      %695 = vmatprep.subr.mxu0 0.0
      %696 = vmatpush1.msra.mxu0 0.0
      %697 = vmatprep.subr.mxu0 0.0
      %698 = vmatpush1.msra.mxu0 0.0
      %699 = vmatprep.subr.mxu0 0.0
      %700 = vmatpush1.msra.mxu0 0.0
      %701 = vmatprep.subr.mxu0 0.0
      %702 = vmatpush1.msra.mxu0 0.0
      %703 = vmatprep.subr.mxu0 0.0
      %704 = vmatpush1.msra.mxu0 0.0
      %705 = vmatprep.mubr.f32.mxu0 0.0
      %706 = vmatmul.mubr.f32.gmra.mrb[0].mxu0 %v630
      %v707 = vpop.f32.mrb[0].mxu0
      %v708 = vadd.f32 0.0, %v707
      %v709 = vpop.f32.mrb[0].mxu0
      %v710 = vadd.f32 0.0, %v709
      %711 = vmatprep.mubr.f32.mxu0 0.0
      %712 = vmatmul.mubr.f32.gmra.mrb[0].mxu0 %v633
      %v713 = vpop.f32.mrb[0].mxu0
      %v714 = vadd.f32 0.0, %v713
      %v715 = vpop.f32.mrb[0].mxu0
      %v716 = vadd.f32 0.0, %v715
      %717 = vdwg.mxu0
      %v718 = vadd.f32 %v600, %v708
      %v719 = vadd.f32 %v601, %v710
      %v720 = vadd.f32 %v602, %v714
      %v721 = vadd.f32 %v603, %v716
      %s722 = scalar_lea.vmem %s1, 64
      %v723 = vld [vmem:[%s722] sm:$0xff]
      %v724 = vld [vmem:[%s722 + $0x8] sm:$0xff]
      %v726 = vsel %vm306, %v723, 0
      %v729 = vsel %vm306, %v724, 0
      %v731 = vsel %vm313, %v252, 0
      %v733 = vsel %vm313, %v254, 0
      %735 = vmatprep.subr.mxu0 %v733
      %736 = vmatpush1.msra.mxu0 %v731
      %737 = vmatprep.subr.mxu0 0.0
      %738 = vmatpush1.msra.mxu0 0.0
      %739 = vmatprep.subr.mxu0 0.0
      %740 = vmatpush1.msra.mxu0 0.0
      %741 = vmatprep.subr.mxu0 0.0
      %742 = vmatpush1.msra.mxu0 0.0
      %743 = vmatprep.subr.mxu0 0.0
      %744 = vmatpush1.msra.mxu0 0.0
      %745 = vmatprep.subr.mxu0 0.0
      %746 = vmatpush1.msra.mxu0 0.0
      %747 = vmatprep.subr.mxu0 0.0
      %748 = vmatpush1.msra.mxu0 0.0
      %749 = vmatprep.subr.mxu0 0.0
      %750 = vmatpush1.msra.mxu0 0.0
      %751 = vmatprep.subr.mxu0 0.0
      %752 = vmatpush1.msra.mxu0 0.0
      %753 = vmatprep.subr.mxu0 0.0
      %754 = vmatpush1.msra.mxu0 0.0
      %755 = vmatprep.subr.mxu0 0.0
      %756 = vmatpush1.msra.mxu0 0.0
      %757 = vmatprep.subr.mxu0 0.0
      %758 = vmatpush1.msra.mxu0 0.0
      %759 = vmatprep.subr.mxu0 0.0
      %760 = vmatpush1.msra.mxu0 0.0
      %761 = vmatprep.subr.mxu0 0.0
      %762 = vmatpush1.msra.mxu0 0.0
      %763 = vmatprep.subr.mxu0 0.0
      %764 = vmatpush1.msra.mxu0 0.0
      %765 = vmatprep.subr.mxu0 0.0
      %766 = vmatpush1.msra.mxu0 0.0
      %767 = vmatprep.subr.mxu0 0.0
      %768 = vmatpush1.msra.mxu0 0.0
      %769 = vmatprep.subr.mxu0 0.0
      %770 = vmatpush1.msra.mxu0 0.0
      %771 = vmatprep.subr.mxu0 0.0
      %772 = vmatpush1.msra.mxu0 0.0
      %773 = vmatprep.subr.mxu0 0.0
      %774 = vmatpush1.msra.mxu0 0.0
      %775 = vmatprep.subr.mxu0 0.0
      %776 = vmatpush1.msra.mxu0 0.0
      %777 = vmatprep.subr.mxu0 0.0
      %778 = vmatpush1.msra.mxu0 0.0
      %779 = vmatprep.subr.mxu0 0.0
      %780 = vmatpush1.msra.mxu0 0.0
      %781 = vmatprep.subr.mxu0 0.0
      %782 = vmatpush1.msra.mxu0 0.0
      %783 = vmatprep.subr.mxu0 0.0
      %784 = vmatpush1.msra.mxu0 0.0
      %785 = vmatprep.subr.mxu0 0.0
      %786 = vmatpush1.msra.mxu0 0.0
      %787 = vmatprep.subr.mxu0 0.0
      %788 = vmatpush1.msra.mxu0 0.0
      %789 = vmatprep.subr.mxu0 0.0
      %790 = vmatpush1.msra.mxu0 0.0
      %791 = vmatprep.subr.mxu0 0.0
      %792 = vmatpush1.msra.mxu0 0.0
      %793 = vmatprep.subr.mxu0 0.0
      %794 = vmatpush1.msra.mxu0 0.0
      %795 = vmatprep.subr.mxu0 0.0
      %796 = vmatpush1.msra.mxu0 0.0
      %797 = vmatprep.subr.mxu0 0.0
      %798 = vmatpush1.msra.mxu0 0.0
      %799 = vmatprep.mubr.f32.mxu0 0.0
      %800 = vmatmul.mubr.f32.gmra.mrb[0].mxu0 %v726
      %v801 = vpop.f32.mrb[0].mxu0
      %v802 = vadd.f32 0.0, %v801
      %v803 = vpop.f32.mrb[0].mxu0
      %v804 = vadd.f32 0.0, %v803
      %805 = vmatprep.mubr.f32.mxu0 0.0
      %806 = vmatmul.mubr.f32.gmra.mrb[0].mxu0 %v729
      %v807 = vpop.f32.mrb[0].mxu0
      %v808 = vadd.f32 0.0, %v807
      %v809 = vpop.f32.mrb[0].mxu0
      %v810 = vadd.f32 0.0, %v809
      %811 = vdwg.mxu0
      %v812 = vadd.f32 %v718, %v802
      %v813 = vadd.f32 %v719, %v804
      %v814 = vadd.f32 %v720, %v808
      %v815 = vadd.f32 %v721, %v810
      %816 = vrot.lane.b32.xlu0 %v252, 127
      %v817 = vpop.permute.xlu0 %816
      %818 = vrot.lane.b32.xlu0 %v254, 127
      %v819 = vpop.permute.xlu0 %818
      %vm820 = vcmp.lt.s32.totalorder %v261, 127
      %v821 = vsel %vm820, %v817, %v819
      %v822 = vsel %vm820, %v819, %v817
      %s823 = scalar_lea.vmem %s5, 10
      %v824 = vld [vmem:[%s823] sm:$0x3]
      %v826 = vlaneseq
      %v827 = vshrl.u32 %v826, 7
      %v828 = vsub.s32 0, %v827
      %v829 = vrot.slane %v824, %v828
      %v830 = vlaneseq
      %v831 = vshrl.u32 %v830, 7
      %v832 = vsub.s32 1, %v831
      %v833 = vrot.slane %v824, %v832
      %v836 = vmul.f32 %v821, %v829
      %v837 = vmul.f32 %v822, %v833
      %s838 = scalar_lea.vmem %s1, 80
      %v839 = vld [vmem:[%s838] sm:$0xff]
      %v840 = vld [vmem:[%s838 + $0x8] sm:$0xff]
      %v842 = vsel %vm306, %v839, 0
      %v845 = vsel %vm306, %v840, 0
      %v848 = vsel %vm313, %v836, 0
      %v851 = vsel %vm313, %v837, 0
      %853 = vmatprep.subr.mxu0 %v851
      %854 = vmatpush1.msra.mxu0 %v848
      %855 = vmatprep.subr.mxu0 0.0
      %856 = vmatpush1.msra.mxu0 0.0
      %857 = vmatprep.subr.mxu0 0.0
      %858 = vmatpush1.msra.mxu0 0.0
      %859 = vmatprep.subr.mxu0 0.0
      %860 = vmatpush1.msra.mxu0 0.0
      %861 = vmatprep.subr.mxu0 0.0
      %862 = vmatpush1.msra.mxu0 0.0
      %863 = vmatprep.subr.mxu0 0.0
      %864 = vmatpush1.msra.mxu0 0.0
      %865 = vmatprep.subr.mxu0 0.0
      %866 = vmatpush1.msra.mxu0 0.0
      %867 = vmatprep.subr.mxu0 0.0
      %868 = vmatpush1.msra.mxu0 0.0
      %869 = vmatprep.subr.mxu0 0.0
      %870 = vmatpush1.msra.mxu0 0.0
      %871 = vmatprep.subr.mxu0 0.0
      %872 = vmatpush1.msra.mxu0 0.0
      %873 = vmatprep.subr.mxu0 0.0
      %874 = vmatpush1.msra.mxu0 0.0
      %875 = vmatprep.subr.mxu0 0.0
      %876 = vmatpush1.msra.mxu0 0.0
      %877 = vmatprep.subr.mxu0 0.0
      %878 = vmatpush1.msra.mxu0 0.0
      %879 = vmatprep.subr.mxu0 0.0
      %880 = vmatpush1.msra.mxu0 0.0
      %881 = vmatprep.subr.mxu0 0.0
      %882 = vmatpush1.msra.mxu0 0.0
      %883 = vmatprep.subr.mxu0 0.0
      %884 = vmatpush1.msra.mxu0 0.0
      %885 = vmatprep.subr.mxu0 0.0
      %886 = vmatpush1.msra.mxu0 0.0
      %887 = vmatprep.subr.mxu0 0.0
      %888 = vmatpush1.msra.mxu0 0.0
      %889 = vmatprep.subr.mxu0 0.0
      %890 = vmatpush1.msra.mxu0 0.0
      %891 = vmatprep.subr.mxu0 0.0
      %892 = vmatpush1.msra.mxu0 0.0
      %893 = vmatprep.subr.mxu0 0.0
      %894 = vmatpush1.msra.mxu0 0.0
      %895 = vmatprep.subr.mxu0 0.0
      %896 = vmatpush1.msra.mxu0 0.0
      %897 = vmatprep.subr.mxu0 0.0
      %898 = vmatpush1.msra.mxu0 0.0
      %899 = vmatprep.subr.mxu0 0.0
      %900 = vmatpush1.msra.mxu0 0.0
      %901 = vmatprep.subr.mxu0 0.0
      %902 = vmatpush1.msra.mxu0 0.0
      %903 = vmatprep.subr.mxu0 0.0
      %904 = vmatpush1.msra.mxu0 0.0
      %905 = vmatprep.subr.mxu0 0.0
      %906 = vmatpush1.msra.mxu0 0.0
      %907 = vmatprep.subr.mxu0 0.0
      %908 = vmatpush1.msra.mxu0 0.0
      %909 = vmatprep.subr.mxu0 0.0
      %910 = vmatpush1.msra.mxu0 0.0
      %911 = vmatprep.subr.mxu0 0.0
      %912 = vmatpush1.msra.mxu0 0.0
      %913 = vmatprep.subr.mxu0 0.0
      %914 = vmatpush1.msra.mxu0 0.0
      %915 = vmatprep.subr.mxu0 0.0
      %916 = vmatpush1.msra.mxu0 0.0
      %917 = vmatprep.mubr.f32.mxu0 0.0
      %918 = vmatmul.mubr.f32.gmra.mrb[0].mxu0 %v842
      %v919 = vpop.f32.mrb[0].mxu0
      %v920 = vadd.f32 0.0, %v919
      %v921 = vpop.f32.mrb[0].mxu0
      %v922 = vadd.f32 0.0, %v921
      %923 = vmatprep.mubr.f32.mxu0 0.0
      %924 = vmatmul.mubr.f32.gmra.mrb[0].mxu0 %v845
      %v925 = vpop.f32.mrb[0].mxu0
      %v926 = vadd.f32 0.0, %v925
      %v927 = vpop.f32.mrb[0].mxu0
      %v928 = vadd.f32 0.0, %v927
      %929 = vdwg.mxu0
      %v930 = vadd.f32 %v812, %v920
      %v931 = vadd.f32 %v813, %v922
      %v932 = vadd.f32 %v814, %v926
      %v933 = vadd.f32 %v815, %v928
      %934 = vrot.lane.b32.xlu0 %v252, 113
      %v935 = vpop.permute.xlu0 %934
      %936 = vrot.lane.b32.xlu0 %v254, 113
      %v937 = vpop.permute.xlu0 %936
      %vm938 = vcmp.lt.s32.totalorder %v261, 113
      %v939 = vsel %vm938, %v935, %v937
      %v940 = vsel %vm938, %v937, %v935
      %s941 = scalar_lea.vmem %s5, 12
      %v942 = vld [vmem:[%s941] sm:$0x3]
      %v944 = vlaneseq
      %v945 = vshrl.u32 %v944, 7
      %v946 = vsub.s32 0, %v945
      %v947 = vrot.slane %v942, %v946
      %v948 = vlaneseq
      %v949 = vshrl.u32 %v948, 7
      %v950 = vsub.s32 1, %v949
      %v951 = vrot.slane %v942, %v950
      %v954 = vmul.f32 %v939, %v947
      %v955 = vmul.f32 %v940, %v951
      %s956 = scalar_lea.vmem %s1, 96
      %v957 = vld [vmem:[%s956] sm:$0xff]
      %v958 = vld [vmem:[%s956 + $0x8] sm:$0xff]
      %v960 = vsel %vm306, %v957, 0
      %v963 = vsel %vm306, %v958, 0
      %v966 = vsel %vm313, %v954, 0
      %v969 = vsel %vm313, %v955, 0
      %971 = vmatprep.subr.mxu0 %v969
      %972 = vmatpush1.msra.mxu0 %v966
      %973 = vmatprep.subr.mxu0 0.0
      %974 = vmatpush1.msra.mxu0 0.0
      %975 = vmatprep.subr.mxu0 0.0
      %976 = vmatpush1.msra.mxu0 0.0
      %977 = vmatprep.subr.mxu0 0.0
      %978 = vmatpush1.msra.mxu0 0.0
      %979 = vmatprep.subr.mxu0 0.0
      %980 = vmatpush1.msra.mxu0 0.0
      %981 = vmatprep.subr.mxu0 0.0
      %982 = vmatpush1.msra.mxu0 0.0
      %983 = vmatprep.subr.mxu0 0.0
      %984 = vmatpush1.msra.mxu0 0.0
      %985 = vmatprep.subr.mxu0 0.0
      %986 = vmatpush1.msra.mxu0 0.0
      %987 = vmatprep.subr.mxu0 0.0
      %988 = vmatpush1.msra.mxu0 0.0
      %989 = vmatprep.subr.mxu0 0.0
      %990 = vmatpush1.msra.mxu0 0.0
      %991 = vmatprep.subr.mxu0 0.0
      %992 = vmatpush1.msra.mxu0 0.0
      %993 = vmatprep.subr.mxu0 0.0
      %994 = vmatpush1.msra.mxu0 0.0
      %995 = vmatprep.subr.mxu0 0.0
      %996 = vmatpush1.msra.mxu0 0.0
      %997 = vmatprep.subr.mxu0 0.0
      %998 = vmatpush1.msra.mxu0 0.0
      %999 = vmatprep.subr.mxu0 0.0
      %1000 = vmatpush1.msra.mxu0 0.0
      %1001 = vmatprep.subr.mxu0 0.0
      %1002 = vmatpush1.msra.mxu0 0.0
      %1003 = vmatprep.subr.mxu0 0.0
      %1004 = vmatpush1.msra.mxu0 0.0
      %1005 = vmatprep.subr.mxu0 0.0
      %1006 = vmatpush1.msra.mxu0 0.0
      %1007 = vmatprep.subr.mxu0 0.0
      %1008 = vmatpush1.msra.mxu0 0.0
      %1009 = vmatprep.subr.mxu0 0.0
      %1010 = vmatpush1.msra.mxu0 0.0
      %1011 = vmatprep.subr.mxu0 0.0
      %1012 = vmatpush1.msra.mxu0 0.0
      %1013 = vmatprep.subr.mxu0 0.0
      %1014 = vmatpush1.msra.mxu0 0.0
      %1015 = vmatprep.subr.mxu0 0.0
      %1016 = vmatpush1.msra.mxu0 0.0
      %1017 = vmatprep.subr.mxu0 0.0
      %1018 = vmatpush1.msra.mxu0 0.0
      %1019 = vmatprep.subr.mxu0 0.0
      %1020 = vmatpush1.msra.mxu0 0.0
      %1021 = vmatprep.subr.mxu0 0.0
      %1022 = vmatpush1.msra.mxu0 0.0
      %1023 = vmatprep.subr.mxu0 0.0
      %1024 = vmatpush1.msra.mxu0 0.0
      %1025 = vmatprep.subr.mxu0 0.0
      %1026 = vmatpush1.msra.mxu0 0.0
      %1027 = vmatprep.subr.mxu0 0.0
      %1028 = vmatpush1.msra.mxu0 0.0
      %1029 = vmatprep.subr.mxu0 0.0
      %1030 = vmatpush1.msra.mxu0 0.0
      %1031 = vmatprep.subr.mxu0 0.0
      %1032 = vmatpush1.msra.mxu0 0.0
      %1033 = vmatprep.subr.mxu0 0.0
      %1034 = vmatpush1.msra.mxu0 0.0
      %1035 = vmatprep.mubr.f32.mxu0 0.0
      %1036 = vmatmul.mubr.f32.gmra.mrb[0].mxu0 %v960
      %v1037 = vpop.f32.mrb[0].mxu0
      %v1038 = vadd.f32 0.0, %v1037
      %v1039 = vpop.f32.mrb[0].mxu0
      %v1040 = vadd.f32 0.0, %v1039
      %1041 = vmatprep.mubr.f32.mxu0 0.0
      %1042 = vmatmul.mubr.f32.gmra.mrb[0].mxu0 %v963
      %v1043 = vpop.f32.mrb[0].mxu0
      %v1044 = vadd.f32 0.0, %v1043
      %v1045 = vpop.f32.mrb[0].mxu0
      %v1046 = vadd.f32 0.0, %v1045
      %1047 = vdwg.mxu0
      %v1048 = vadd.f32 %v930, %v1038
      %v1049 = vadd.f32 %v931, %v1040
      %v1050 = vadd.f32 %v932, %v1044
      %v1051 = vadd.f32 %v933, %v1046
      %1052 = vrot.lane.b32.xlu0 %v252, 112
      %v1053 = vpop.permute.xlu0 %1052
      %1054 = vrot.lane.b32.xlu0 %v254, 112
      %v1055 = vpop.permute.xlu0 %1054
      %vm1056 = vcmp.lt.s32.totalorder %v261, 112
      %v1057 = vsel %vm1056, %v1053, %v1055
      %v1058 = vsel %vm1056, %v1055, %v1053
      %s1059 = scalar_lea.vmem %s5, 14
      %v1060 = vld [vmem:[%s1059] sm:$0x3]
      %v1062 = vlaneseq
      %v1063 = vshrl.u32 %v1062, 7
      %v1064 = vsub.s32 0, %v1063
      %v1065 = vrot.slane %v1060, %v1064
      %v1066 = vlaneseq
      %v1067 = vshrl.u32 %v1066, 7
      %v1068 = vsub.s32 1, %v1067
      %v1069 = vrot.slane %v1060, %v1068
      %v1072 = vmul.f32 %v1057, %v1065
      %v1073 = vmul.f32 %v1058, %v1069
      %s1074 = scalar_lea.vmem %s1, 112
      %v1075 = vld [vmem:[%s1074] sm:$0xff]
      %v1076 = vld [vmem:[%s1074 + $0x8] sm:$0xff]
      %v1078 = vsel %vm306, %v1075, 0
      %v1081 = vsel %vm306, %v1076, 0
      %v1084 = vsel %vm313, %v1072, 0
      %v1087 = vsel %vm313, %v1073, 0
      %1089 = vmatprep.subr.mxu0 %v1087
      %1090 = vmatpush1.msra.mxu0 %v1084
      %1091 = vmatprep.subr.mxu0 0.0
      %1092 = vmatpush1.msra.mxu0 0.0
      %1093 = vmatprep.subr.mxu0 0.0
      %1094 = vmatpush1.msra.mxu0 0.0
      %1095 = vmatprep.subr.mxu0 0.0
      %1096 = vmatpush1.msra.mxu0 0.0
      %1097 = vmatprep.subr.mxu0 0.0
      %1098 = vmatpush1.msra.mxu0 0.0
      %1099 = vmatprep.subr.mxu0 0.0
      %1100 = vmatpush1.msra.mxu0 0.0
      %1101 = vmatprep.subr.mxu0 0.0
      %1102 = vmatpush1.msra.mxu0 0.0
      %1103 = vmatprep.subr.mxu0 0.0
      %1104 = vmatpush1.msra.mxu0 0.0
      %1105 = vmatprep.subr.mxu0 0.0
      %1106 = vmatpush1.msra.mxu0 0.0
      %1107 = vmatprep.subr.mxu0 0.0
      %1108 = vmatpush1.msra.mxu0 0.0
      %1109 = vmatprep.subr.mxu0 0.0
      %1110 = vmatpush1.msra.mxu0 0.0
      %1111 = vmatprep.subr.mxu0 0.0
      %1112 = vmatpush1.msra.mxu0 0.0
      %1113 = vmatprep.subr.mxu0 0.0
      %1114 = vmatpush1.msra.mxu0 0.0
      %1115 = vmatprep.subr.mxu0 0.0
      %1116 = vmatpush1.msra.mxu0 0.0
      %1117 = vmatprep.subr.mxu0 0.0
      %1118 = vmatpush1.msra.mxu0 0.0
      %1119 = vmatprep.subr.mxu0 0.0
      %1120 = vmatpush1.msra.mxu0 0.0
      %1121 = vmatprep.subr.mxu0 0.0
      %1122 = vmatpush1.msra.mxu0 0.0
      %1123 = vmatprep.subr.mxu0 0.0
      %1124 = vmatpush1.msra.mxu0 0.0
      %1125 = vmatprep.subr.mxu0 0.0
      %1126 = vmatpush1.msra.mxu0 0.0
      %1127 = vmatprep.subr.mxu0 0.0
      %1128 = vmatpush1.msra.mxu0 0.0
      %1129 = vmatprep.subr.mxu0 0.0
      %1130 = vmatpush1.msra.mxu0 0.0
      %1131 = vmatprep.subr.mxu0 0.0
      %1132 = vmatpush1.msra.mxu0 0.0
      %1133 = vmatprep.subr.mxu0 0.0
      %1134 = vmatpush1.msra.mxu0 0.0
      %1135 = vmatprep.subr.mxu0 0.0
      %1136 = vmatpush1.msra.mxu0 0.0
      %1137 = vmatprep.subr.mxu0 0.0
      %1138 = vmatpush1.msra.mxu0 0.0
      %1139 = vmatprep.subr.mxu0 0.0
      %1140 = vmatpush1.msra.mxu0 0.0
      %1141 = vmatprep.subr.mxu0 0.0
      %1142 = vmatpush1.msra.mxu0 0.0
      %1143 = vmatprep.subr.mxu0 0.0
      %1144 = vmatpush1.msra.mxu0 0.0
      %1145 = vmatprep.subr.mxu0 0.0
      %1146 = vmatpush1.msra.mxu0 0.0
      %1147 = vmatprep.subr.mxu0 0.0
      %1148 = vmatpush1.msra.mxu0 0.0
      %1149 = vmatprep.subr.mxu0 0.0
      %1150 = vmatpush1.msra.mxu0 0.0
      %1151 = vmatprep.subr.mxu0 0.0
      %1152 = vmatpush1.msra.mxu0 0.0
      %1153 = vmatprep.mubr.f32.mxu0 0.0
      %1154 = vmatmul.mubr.f32.gmra.mrb[0].mxu0 %v1078
      %v1155 = vpop.f32.mrb[0].mxu0
      %v1156 = vadd.f32 0.0, %v1155
      %v1157 = vpop.f32.mrb[0].mxu0
      %v1158 = vadd.f32 0.0, %v1157
      %1159 = vmatprep.mubr.f32.mxu0 0.0
      %1160 = vmatmul.mubr.f32.gmra.mrb[0].mxu0 %v1081
      %v1161 = vpop.f32.mrb[0].mxu0
      %v1162 = vadd.f32 0.0, %v1161
      %v1163 = vpop.f32.mrb[0].mxu0
      %v1164 = vadd.f32 0.0, %v1163
      %1165 = vdwg.mxu0
      %v1166 = vadd.f32 %v1048, %v1156
      %v1167 = vadd.f32 %v1049, %v1158
      %v1168 = vadd.f32 %v1050, %v1162
      %v1169 = vadd.f32 %v1051, %v1164
      %1170 = vrot.lane.b32.xlu0 %v252, 111
      %v1171 = vpop.permute.xlu0 %1170
      %1172 = vrot.lane.b32.xlu0 %v254, 111
      %v1173 = vpop.permute.xlu0 %1172
      %vm1174 = vcmp.lt.s32.totalorder %v261, 111
      %v1175 = vsel %vm1174, %v1171, %v1173
      %v1176 = vsel %vm1174, %v1173, %v1171
      %s1177 = scalar_lea.vmem %s5, 16
      %v1178 = vld [vmem:[%s1177] sm:$0x3]
      %v1180 = vlaneseq
      %v1181 = vshrl.u32 %v1180, 7
      %v1182 = vsub.s32 0, %v1181
      %v1183 = vrot.slane %v1178, %v1182
      %v1184 = vlaneseq
      %v1185 = vshrl.u32 %v1184, 7
      %v1186 = vsub.s32 1, %v1185
      %v1187 = vrot.slane %v1178, %v1186
      %v1190 = vmul.f32 %v1175, %v1183
      %v1191 = vmul.f32 %v1176, %v1187
      %s1192 = scalar_lea.vmem %s1, 128
      %v1193 = vld [vmem:[%s1192] sm:$0xff]
      %v1194 = vld [vmem:[%s1192 + $0x8] sm:$0xff]
      %v1196 = vsel %vm306, %v1193, 0
      %v1199 = vsel %vm306, %v1194, 0
      %v1202 = vsel %vm313, %v1190, 0
      %v1205 = vsel %vm313, %v1191, 0
      %1207 = vmatprep.subr.mxu0 %v1205
      %1208 = vmatpush1.msra.mxu0 %v1202
      %1209 = vmatprep.subr.mxu0 0.0
      %1210 = vmatpush1.msra.mxu0 0.0
      %1211 = vmatprep.subr.mxu0 0.0
      %1212 = vmatpush1.msra.mxu0 0.0
      %1213 = vmatprep.subr.mxu0 0.0
      %1214 = vmatpush1.msra.mxu0 0.0
      %1215 = vmatprep.subr.mxu0 0.0
      %1216 = vmatpush1.msra.mxu0 0.0
      %1217 = vmatprep.subr.mxu0 0.0
      %1218 = vmatpush1.msra.mxu0 0.0
      %1219 = vmatprep.subr.mxu0 0.0
      %1220 = vmatpush1.msra.mxu0 0.0
      %1221 = vmatprep.subr.mxu0 0.0
      %1222 = vmatpush1.msra.mxu0 0.0
      %1223 = vmatprep.subr.mxu0 0.0
      %1224 = vmatpush1.msra.mxu0 0.0
      %1225 = vmatprep.subr.mxu0 0.0
      %1226 = vmatpush1.msra.mxu0 0.0
      %1227 = vmatprep.subr.mxu0 0.0
      %1228 = vmatpush1.msra.mxu0 0.0
      %1229 = vmatprep.subr.mxu0 0.0
      %1230 = vmatpush1.msra.mxu0 0.0
      %1231 = vmatprep.subr.mxu0 0.0
      %1232 = vmatpush1.msra.mxu0 0.0
      %1233 = vmatprep.subr.mxu0 0.0
      %1234 = vmatpush1.msra.mxu0 0.0
      %1235 = vmatprep.subr.mxu0 0.0
      %1236 = vmatpush1.msra.mxu0 0.0
      %1237 = vmatprep.subr.mxu0 0.0
      %1238 = vmatpush1.msra.mxu0 0.0
      %1239 = vmatprep.subr.mxu0 0.0
      %1240 = vmatpush1.msra.mxu0 0.0
      %1241 = vmatprep.subr.mxu0 0.0
      %1242 = vmatpush1.msra.mxu0 0.0
      %1243 = vmatprep.subr.mxu0 0.0
      %1244 = vmatpush1.msra.mxu0 0.0
      %1245 = vmatprep.subr.mxu0 0.0
      %1246 = vmatpush1.msra.mxu0 0.0
      %1247 = vmatprep.subr.mxu0 0.0
      %1248 = vmatpush1.msra.mxu0 0.0
      %1249 = vmatprep.subr.mxu0 0.0
      %1250 = vmatpush1.msra.mxu0 0.0
      %1251 = vmatprep.subr.mxu0 0.0
      %1252 = vmatpush1.msra.mxu0 0.0
      %1253 = vmatprep.subr.mxu0 0.0
      %1254 = vmatpush1.msra.mxu0 0.0
      %1255 = vmatprep.subr.mxu0 0.0
      %1256 = vmatpush1.msra.mxu0 0.0
      %1257 = vmatprep.subr.mxu0 0.0
      %1258 = vmatpush1.msra.mxu0 0.0
      %1259 = vmatprep.subr.mxu0 0.0
      %1260 = vmatpush1.msra.mxu0 0.0
      %1261 = vmatprep.subr.mxu0 0.0
      %1262 = vmatpush1.msra.mxu0 0.0
      %1263 = vmatprep.subr.mxu0 0.0
      %1264 = vmatpush1.msra.mxu0 0.0
      %1265 = vmatprep.subr.mxu0 0.0
      %1266 = vmatpush1.msra.mxu0 0.0
      %1267 = vmatprep.subr.mxu0 0.0
      %1268 = vmatpush1.msra.mxu0 0.0
      %1269 = vmatprep.subr.mxu0 0.0
      %1270 = vmatpush1.msra.mxu0 0.0
      %1271 = vmatprep.mubr.f32.mxu0 0.0
      %1272 = vmatmul.mubr.f32.gmra.mrb[0].mxu0 %v1196
      %v1273 = vpop.f32.mrb[0].mxu0
      %v1274 = vadd.f32 0.0, %v1273
      %v1275 = vpop.f32.mrb[0].mxu0
      %v1276 = vadd.f32 0.0, %v1275
      %1277 = vmatprep.mubr.f32.mxu0 0.0
      %1278 = vmatmul.mubr.f32.gmra.mrb[0].mxu0 %v1199
      %v1279 = vpop.f32.mrb[0].mxu0
      %v1280 = vadd.f32 0.0, %v1279
      %v1281 = vpop.f32.mrb[0].mxu0
      %v1282 = vadd.f32 0.0, %v1281
      %1283 = vdwg.mxu0
      %v1284 = vadd.f32 %v1166, %v1274
      %v1285 = vadd.f32 %v1167, %v1276
      %v1286 = vadd.f32 %v1168, %v1280
      %v1287 = vadd.f32 %v1169, %v1282
      %v1288 = vld [vmem:[%s2] sm:$0xff]
      %v1289 = vld [vmem:[%s2 + $0x8] sm:$0xff]
      %1291 = vset.pattern.permute.xlu0 0
      %1292 = vperm.xlu0 %1291, %v1288
      %v1293 = vpop.permute.xlu0 %1292
      %1296 = vset.pattern.permute.xlu0 0
      %1297 = vperm.xlu0 %1296, %v1289
      %v1298 = vpop.permute.xlu0 %1297
      %v1300 = vadd.f32 %v1284, %v1293
      %v1301 = vadd.f32 %v1285, %v1293
      %v1302 = vadd.f32 %v1286, %v1298
      %v1303 = vadd.f32 %v1287, %v1298
      %v1304 = vmax.f32 %v1300, 0.0
      %v1305 = vmax.f32 %v1301, 0.0
      %v1306 = vmax.f32 %v1302, 0.0
      %v1307 = vmax.f32 %v1303, 0.0
      %1308 = vrot.lane.b32.xlu0 %v1304, 17
      %v1309 = vpop.permute.xlu0 %1308
      %1310 = vrot.lane.b32.xlu0 %v1306, 17
      %v1311 = vpop.permute.xlu0 %1310
      %1312 = vrot.lane.b32.xlu0 %v1305, 17
      %v1313 = vpop.permute.xlu0 %1312
      %1314 = vrot.lane.b32.xlu0 %v1307, 17
      %v1315 = vpop.permute.xlu0 %1314
      %v1316 = vsel %vm262, %v1309, %v1313
      %v1317 = vsel %vm262, %v1311, %v1315
      %v1318 = vsel %vm262, %v1313, %v1309
      %v1319 = vsel %vm262, %v1315, %v1311
      %v1320 = vmul.f32 %v1318, %v270
      %v1321 = vmul.f32 %v1316, %v274
      %v1322 = vmul.f32 %v1319, %v270
      %v1323 = vmul.f32 %v1317, %v274
      %v1324 = vld [vmem:[%s3] sm:$0x1f]
      %1325 = vrot.lane.b32.xlu0 %v1304, 16
      %v1326 = vpop.permute.xlu0 %1325
      %1327 = vrot.lane.b32.xlu0 %v1306, 16
      %v1328 = vpop.permute.xlu0 %1327
      %1329 = vrot.lane.b32.xlu0 %v1305, 16
      %v1330 = vpop.permute.xlu0 %1329
      %1331 = vrot.lane.b32.xlu0 %v1307, 16
      %v1332 = vpop.permute.xlu0 %1331
      %v1333 = vsel %vm285, %v1326, %v1330
      %v1334 = vsel %vm285, %v1328, %v1332
      %v1335 = vsel %vm285, %v1330, %v1326
      %v1336 = vsel %vm285, %v1332, %v1328
      %v1337 = vmul.f32 %v1335, %v294
      %v1338 = vmul.f32 %v1333, %v298
      %v1339 = vmul.f32 %v1336, %v294
      %v1340 = vmul.f32 %v1334, %v298
      %s1341 = scalar_lea.vmem %s3, 8
      %v1342 = vld [vmem:[%s1341] sm:$0x1f]
      %vm1343 = vcmask 130048
      %v1345 = vsel %vm1343, %v1342, 0
      %1347 = vmatprep.subr.mxu0 %v1338
      %1348 = vmatpush1.msra.mxu0 %v1337
      %1349 = vmatprep.subr.mxu0 %v1340
      %1350 = vmatpush1.msra.mxu0 %v1339
      %1351 = vmatprep.subr.mxu0 0.0
      %1352 = vmatpush1.msra.mxu0 0.0
      %1353 = vmatprep.subr.mxu0 0.0
      %1354 = vmatpush1.msra.mxu0 0.0
      %1355 = vmatprep.subr.mxu0 0.0
      %1356 = vmatpush1.msra.mxu0 0.0
      %1357 = vmatprep.subr.mxu0 0.0
      %1358 = vmatpush1.msra.mxu0 0.0
      %1359 = vmatprep.subr.mxu0 0.0
      %1360 = vmatpush1.msra.mxu0 0.0
      %1361 = vmatprep.subr.mxu0 0.0
      %1362 = vmatpush1.msra.mxu0 0.0
      %1363 = vmatprep.subr.mxu0 0.0
      %1364 = vmatpush1.msra.mxu0 0.0
      %1365 = vmatprep.subr.mxu0 0.0
      %1366 = vmatpush1.msra.mxu0 0.0
      %1367 = vmatprep.subr.mxu0 0.0
      %1368 = vmatpush1.msra.mxu0 0.0
      %1369 = vmatprep.subr.mxu0 0.0
      %1370 = vmatpush1.msra.mxu0 0.0
      %1371 = vmatprep.subr.mxu0 0.0
      %1372 = vmatpush1.msra.mxu0 0.0
      %1373 = vmatprep.subr.mxu0 0.0
      %1374 = vmatpush1.msra.mxu0 0.0
      %1375 = vmatprep.subr.mxu0 0.0
      %1376 = vmatpush1.msra.mxu0 0.0
      %1377 = vmatprep.subr.mxu0 0.0
      %1378 = vmatpush1.msra.mxu0 0.0
      %1379 = vmatprep.subr.mxu0 0.0
      %1380 = vmatpush1.msra.mxu0 0.0
      %1381 = vmatprep.subr.mxu0 0.0
      %1382 = vmatpush1.msra.mxu0 0.0
      %1383 = vmatprep.subr.mxu0 0.0
      %1384 = vmatpush1.msra.mxu0 0.0
      %1385 = vmatprep.subr.mxu0 0.0
      %1386 = vmatpush1.msra.mxu0 0.0
      %1387 = vmatprep.subr.mxu0 0.0
      %1388 = vmatpush1.msra.mxu0 0.0
      %1389 = vmatprep.subr.mxu0 0.0
      %1390 = vmatpush1.msra.mxu0 0.0
      %1391 = vmatprep.subr.mxu0 0.0
      %1392 = vmatpush1.msra.mxu0 0.0
      %1393 = vmatprep.subr.mxu0 0.0
      %1394 = vmatpush1.msra.mxu0 0.0
      %1395 = vmatprep.subr.mxu0 0.0
      %1396 = vmatpush1.msra.mxu0 0.0
      %1397 = vmatprep.subr.mxu0 0.0
      %1398 = vmatpush1.msra.mxu0 0.0
      %1399 = vmatprep.subr.mxu0 0.0
      %1400 = vmatpush1.msra.mxu0 0.0
      %1401 = vmatprep.subr.mxu0 0.0
      %1402 = vmatpush1.msra.mxu0 0.0
      %1403 = vmatprep.subr.mxu0 0.0
      %1404 = vmatpush1.msra.mxu0 0.0
      %1405 = vmatprep.subr.mxu0 0.0
      %1406 = vmatpush1.msra.mxu0 0.0
      %1407 = vmatprep.subr.mxu0 0.0
      %1408 = vmatpush1.msra.mxu0 0.0
      %1409 = vmatprep.subr.mxu0 0.0
      %1410 = vmatpush1.msra.mxu0 0.0
      %1411 = vmatprep.mubr.f32.mxu0 0.0
      %1412 = vmatmul.mubr.f32.gmra.mrb[0].mxu0 %v1345
      %v1413 = vpop.f32.mrb[0].mxu0
      %v1414 = vadd.f32 0.0, %v1413
      %v1415 = vpop.f32.mrb[0].mxu0
      %v1416 = vadd.f32 0.0, %v1415
      %1417 = vdwg.mxu0
      %v1419 = vsel %vm1343, %v1324, 0
      %1421 = vmatprep.subr.mxu0 %v1321
      %1422 = vmatpush1.msra.mxu0 %v1320
      %1423 = vmatprep.subr.mxu0 %v1323
      %1424 = vmatpush1.msra.mxu0 %v1322
      %1425 = vmatprep.subr.mxu0 0.0
      %1426 = vmatpush1.msra.mxu0 0.0
      %1427 = vmatprep.subr.mxu0 0.0
      %1428 = vmatpush1.msra.mxu0 0.0
      %1429 = vmatprep.subr.mxu0 0.0
      %1430 = vmatpush1.msra.mxu0 0.0
      %1431 = vmatprep.subr.mxu0 0.0
      %1432 = vmatpush1.msra.mxu0 0.0
      %1433 = vmatprep.subr.mxu0 0.0
      %1434 = vmatpush1.msra.mxu0 0.0
      %1435 = vmatprep.subr.mxu0 0.0
      %1436 = vmatpush1.msra.mxu0 0.0
      %1437 = vmatprep.subr.mxu0 0.0
      %1438 = vmatpush1.msra.mxu0 0.0
      %1439 = vmatprep.subr.mxu0 0.0
      %1440 = vmatpush1.msra.mxu0 0.0
      %1441 = vmatprep.subr.mxu0 0.0
      %1442 = vmatpush1.msra.mxu0 0.0
      %1443 = vmatprep.subr.mxu0 0.0
      %1444 = vmatpush1.msra.mxu0 0.0
      %1445 = vmatprep.subr.mxu0 0.0
      %1446 = vmatpush1.msra.mxu0 0.0
      %1447 = vmatprep.subr.mxu0 0.0
      %1448 = vmatpush1.msra.mxu0 0.0
      %1449 = vmatprep.subr.mxu0 0.0
      %1450 = vmatpush1.msra.mxu0 0.0
      %1451 = vmatprep.subr.mxu0 0.0
      %1452 = vmatpush1.msra.mxu0 0.0
      %1453 = vmatprep.subr.mxu0 0.0
      %1454 = vmatpush1.msra.mxu0 0.0
      %1455 = vmatprep.subr.mxu0 0.0
      %1456 = vmatpush1.msra.mxu0 0.0
      %1457 = vmatprep.subr.mxu0 0.0
      %1458 = vmatpush1.msra.mxu0 0.0
      %1459 = vmatprep.subr.mxu0 0.0
      %1460 = vmatpush1.msra.mxu0 0.0
      %1461 = vmatprep.subr.mxu0 0.0
      %1462 = vmatpush1.msra.mxu0 0.0
      %1463 = vmatprep.subr.mxu0 0.0
      %1464 = vmatpush1.msra.mxu0 0.0
      %1465 = vmatprep.subr.mxu0 0.0
      %1466 = vmatpush1.msra.mxu0 0.0
      %1467 = vmatprep.subr.mxu0 0.0
      %1468 = vmatpush1.msra.mxu0 0.0
      %1469 = vmatprep.subr.mxu0 0.0
      %1470 = vmatpush1.msra.mxu0 0.0
      %1471 = vmatprep.subr.mxu0 0.0
      %1472 = vmatpush1.msra.mxu0 0.0
      %1473 = vmatprep.subr.mxu0 0.0
      %1474 = vmatpush1.msra.mxu0 0.0
      %1475 = vmatprep.subr.mxu0 0.0
      %1476 = vmatpush1.msra.mxu0 0.0
      %1477 = vmatprep.subr.mxu0 0.0
      %1478 = vmatpush1.msra.mxu0 0.0
      %1479 = vmatprep.subr.mxu0 0.0
      %1480 = vmatpush1.msra.mxu0 0.0
      %1481 = vmatprep.subr.mxu0 0.0
      %1482 = vmatpush1.msra.mxu0 0.0
      %1483 = vmatprep.subr.mxu0 0.0
      %1484 = vmatpush1.msra.mxu0 0.0
      %1485 = vmatprep.mubr.f32.mxu0 0.0
      %1486 = vmatmul.mubr.f32.gmra.mrb[0].mxu0 %v1419
      %v1487 = vpop.f32.mrb[0].mxu0
      %v1488 = vadd.f32 %v1414, %v1487
      %v1489 = vpop.f32.mrb[0].mxu0
      %v1490 = vadd.f32 %v1416, %v1489
      %1491 = vdwg.mxu0
      %1492 = vrot.lane.b32.xlu0 %v1304, 15
      %v1493 = vpop.permute.xlu0 %1492
      %1494 = vrot.lane.b32.xlu0 %v1306, 15
      %v1495 = vpop.permute.xlu0 %1494
      %1496 = vrot.lane.b32.xlu0 %v1305, 15
      %v1497 = vpop.permute.xlu0 %1496
      %1498 = vrot.lane.b32.xlu0 %v1307, 15
      %v1499 = vpop.permute.xlu0 %1498
      %v1500 = vsel %vm490, %v1493, %v1497
      %v1501 = vsel %vm490, %v1495, %v1499
      %v1502 = vsel %vm490, %v1497, %v1493
      %v1503 = vsel %vm490, %v1499, %v1495
      %v1504 = vmul.f32 %v1502, %v499
      %v1505 = vmul.f32 %v1500, %v503
      %v1506 = vmul.f32 %v1503, %v499
      %v1507 = vmul.f32 %v1501, %v503
      %s1508 = scalar_lea.vmem %s3, 16
      %v1509 = vld [vmem:[%s1508] sm:$0x1f]
      %v1511 = vsel %vm1343, %v1509, 0
      %1513 = vmatprep.subr.mxu0 %v1505
      %1514 = vmatpush1.msra.mxu0 %v1504
      %1515 = vmatprep.subr.mxu0 %v1507
      %1516 = vmatpush1.msra.mxu0 %v1506
      %1517 = vmatprep.subr.mxu0 0.0
      %1518 = vmatpush1.msra.mxu0 0.0
      %1519 = vmatprep.subr.mxu0 0.0
      %1520 = vmatpush1.msra.mxu0 0.0
      %1521 = vmatprep.subr.mxu0 0.0
      %1522 = vmatpush1.msra.mxu0 0.0
      %1523 = vmatprep.subr.mxu0 0.0
      %1524 = vmatpush1.msra.mxu0 0.0
      %1525 = vmatprep.subr.mxu0 0.0
      %1526 = vmatpush1.msra.mxu0 0.0
      %1527 = vmatprep.subr.mxu0 0.0
      %1528 = vmatpush1.msra.mxu0 0.0
      %1529 = vmatprep.subr.mxu0 0.0
      %1530 = vmatpush1.msra.mxu0 0.0
      %1531 = vmatprep.subr.mxu0 0.0
      %1532 = vmatpush1.msra.mxu0 0.0
      %1533 = vmatprep.subr.mxu0 0.0
      %1534 = vmatpush1.msra.mxu0 0.0
      %1535 = vmatprep.subr.mxu0 0.0
      %1536 = vmatpush1.msra.mxu0 0.0
      %1537 = vmatprep.subr.mxu0 0.0
      %1538 = vmatpush1.msra.mxu0 0.0
      %1539 = vmatprep.subr.mxu0 0.0
      %1540 = vmatpush1.msra.mxu0 0.0
      %1541 = vmatprep.subr.mxu0 0.0
      %1542 = vmatpush1.msra.mxu0 0.0
      %1543 = vmatprep.subr.mxu0 0.0
      %1544 = vmatpush1.msra.mxu0 0.0
      %1545 = vmatprep.subr.mxu0 0.0
      %1546 = vmatpush1.msra.mxu0 0.0
      %1547 = vmatprep.subr.mxu0 0.0
      %1548 = vmatpush1.msra.mxu0 0.0
      %1549 = vmatprep.subr.mxu0 0.0
      %1550 = vmatpush1.msra.mxu0 0.0
      %1551 = vmatprep.subr.mxu0 0.0
      %1552 = vmatpush1.msra.mxu0 0.0
      %1553 = vmatprep.subr.mxu0 0.0
      %1554 = vmatpush1.msra.mxu0 0.0
      %1555 = vmatprep.subr.mxu0 0.0
      %1556 = vmatpush1.msra.mxu0 0.0
      %1557 = vmatprep.subr.mxu0 0.0
      %1558 = vmatpush1.msra.mxu0 0.0
      %1559 = vmatprep.subr.mxu0 0.0
      %1560 = vmatpush1.msra.mxu0 0.0
      %1561 = vmatprep.subr.mxu0 0.0
      %1562 = vmatpush1.msra.mxu0 0.0
      %1563 = vmatprep.subr.mxu0 0.0
      %1564 = vmatpush1.msra.mxu0 0.0
      %1565 = vmatprep.subr.mxu0 0.0
      %1566 = vmatpush1.msra.mxu0 0.0
      %1567 = vmatprep.subr.mxu0 0.0
      %1568 = vmatpush1.msra.mxu0 0.0
      %1569 = vmatprep.subr.mxu0 0.0
      %1570 = vmatpush1.msra.mxu0 0.0
      %1571 = vmatprep.subr.mxu0 0.0
      %1572 = vmatpush1.msra.mxu0 0.0
      %1573 = vmatprep.subr.mxu0 0.0
      %1574 = vmatpush1.msra.mxu0 0.0
      %1575 = vmatprep.subr.mxu0 0.0
      %1576 = vmatpush1.msra.mxu0 0.0
      %1577 = vmatprep.mubr.f32.mxu0 0.0
      %1578 = vmatmul.mubr.f32.gmra.mrb[0].mxu0 %v1511
      %v1579 = vpop.f32.mrb[0].mxu0
      %v1580 = vadd.f32 0.0, %v1579
      %v1581 = vpop.f32.mrb[0].mxu0
      %v1582 = vadd.f32 0.0, %v1581
      %1583 = vdwg.mxu0
      %v1584 = vadd.f32 %v1488, %v1580
      %v1585 = vadd.f32 %v1490, %v1582
      %1586 = vrot.lane.b32.xlu0 %v1304, 1
      %v1587 = vpop.permute.xlu0 %1586
      %1588 = vrot.lane.b32.xlu0 %v1306, 1
      %v1589 = vpop.permute.xlu0 %1588
      %1590 = vrot.lane.b32.xlu0 %v1305, 1
      %v1591 = vpop.permute.xlu0 %1590
      %1592 = vrot.lane.b32.xlu0 %v1307, 1
      %v1593 = vpop.permute.xlu0 %1592
      %v1594 = vsel %vm608, %v1587, %v1591
      %v1595 = vsel %vm608, %v1589, %v1593
      %v1596 = vsel %vm608, %v1591, %v1587
      %v1597 = vsel %vm608, %v1593, %v1589
      %v1598 = vmul.f32 %v1596, %v617
      %v1599 = vmul.f32 %v1594, %v621
      %v1600 = vmul.f32 %v1597, %v617
      %v1601 = vmul.f32 %v1595, %v621
      %s1602 = scalar_lea.vmem %s3, 24
      %v1603 = vld [vmem:[%s1602] sm:$0x1f]
      %v1605 = vsel %vm1343, %v1603, 0
      %1607 = vmatprep.subr.mxu0 %v1599
      %1608 = vmatpush1.msra.mxu0 %v1598
      %1609 = vmatprep.subr.mxu0 %v1601
      %1610 = vmatpush1.msra.mxu0 %v1600
      %1611 = vmatprep.subr.mxu0 0.0
      %1612 = vmatpush1.msra.mxu0 0.0
      %1613 = vmatprep.subr.mxu0 0.0
      %1614 = vmatpush1.msra.mxu0 0.0
      %1615 = vmatprep.subr.mxu0 0.0
      %1616 = vmatpush1.msra.mxu0 0.0
      %1617 = vmatprep.subr.mxu0 0.0
      %1618 = vmatpush1.msra.mxu0 0.0
      %1619 = vmatprep.subr.mxu0 0.0
      %1620 = vmatpush1.msra.mxu0 0.0
      %1621 = vmatprep.subr.mxu0 0.0
      %1622 = vmatpush1.msra.mxu0 0.0
      %1623 = vmatprep.subr.mxu0 0.0
      %1624 = vmatpush1.msra.mxu0 0.0
      %1625 = vmatprep.subr.mxu0 0.0
      %1626 = vmatpush1.msra.mxu0 0.0
      %1627 = vmatprep.subr.mxu0 0.0
      %1628 = vmatpush1.msra.mxu0 0.0
      %1629 = vmatprep.subr.mxu0 0.0
      %1630 = vmatpush1.msra.mxu0 0.0
      %1631 = vmatprep.subr.mxu0 0.0
      %1632 = vmatpush1.msra.mxu0 0.0
      %1633 = vmatprep.subr.mxu0 0.0
      %1634 = vmatpush1.msra.mxu0 0.0
      %1635 = vmatprep.subr.mxu0 0.0
      %1636 = vmatpush1.msra.mxu0 0.0
      %1637 = vmatprep.subr.mxu0 0.0
      %1638 = vmatpush1.msra.mxu0 0.0
      %1639 = vmatprep.subr.mxu0 0.0
      %1640 = vmatpush1.msra.mxu0 0.0
      %1641 = vmatprep.subr.mxu0 0.0
      %1642 = vmatpush1.msra.mxu0 0.0
      %1643 = vmatprep.subr.mxu0 0.0
      %1644 = vmatpush1.msra.mxu0 0.0
      %1645 = vmatprep.subr.mxu0 0.0
      %1646 = vmatpush1.msra.mxu0 0.0
      %1647 = vmatprep.subr.mxu0 0.0
      %1648 = vmatpush1.msra.mxu0 0.0
      %1649 = vmatprep.subr.mxu0 0.0
      %1650 = vmatpush1.msra.mxu0 0.0
      %1651 = vmatprep.subr.mxu0 0.0
      %1652 = vmatpush1.msra.mxu0 0.0
      %1653 = vmatprep.subr.mxu0 0.0
      %1654 = vmatpush1.msra.mxu0 0.0
      %1655 = vmatprep.subr.mxu0 0.0
      %1656 = vmatpush1.msra.mxu0 0.0
      %1657 = vmatprep.subr.mxu0 0.0
      %1658 = vmatpush1.msra.mxu0 0.0
      %1659 = vmatprep.subr.mxu0 0.0
      %1660 = vmatpush1.msra.mxu0 0.0
      %1661 = vmatprep.subr.mxu0 0.0
      %1662 = vmatpush1.msra.mxu0 0.0
      %1663 = vmatprep.subr.mxu0 0.0
      %1664 = vmatpush1.msra.mxu0 0.0
      %1665 = vmatprep.subr.mxu0 0.0
      %1666 = vmatpush1.msra.mxu0 0.0
      %1667 = vmatprep.subr.mxu0 0.0
      %1668 = vmatpush1.msra.mxu0 0.0
      %1669 = vmatprep.subr.mxu0 0.0
      %1670 = vmatpush1.msra.mxu0 0.0
      %1671 = vmatprep.mubr.f32.mxu0 0.0
      %1672 = vmatmul.mubr.f32.gmra.mrb[0].mxu0 %v1605
      %v1673 = vpop.f32.mrb[0].mxu0
      %v1674 = vadd.f32 0.0, %v1673
      %v1675 = vpop.f32.mrb[0].mxu0
      %v1676 = vadd.f32 0.0, %v1675
      %1677 = vdwg.mxu0
      %v1678 = vadd.f32 %v1584, %v1674
      %v1679 = vadd.f32 %v1585, %v1676
      %s1680 = scalar_lea.vmem %s3, 32
      %v1681 = vld [vmem:[%s1680] sm:$0x1f]
      %v1683 = vsel %vm1343, %v1681, 0
      %1685 = vmatprep.subr.mxu0 %v1305
      %1686 = vmatpush1.msra.mxu0 %v1304
      %1687 = vmatprep.subr.mxu0 %v1307
      %1688 = vmatpush1.msra.mxu0 %v1306
      %1689 = vmatprep.subr.mxu0 0.0
      %1690 = vmatpush1.msra.mxu0 0.0
      %1691 = vmatprep.subr.mxu0 0.0
      %1692 = vmatpush1.msra.mxu0 0.0
      %1693 = vmatprep.subr.mxu0 0.0
      %1694 = vmatpush1.msra.mxu0 0.0
      %1695 = vmatprep.subr.mxu0 0.0
      %1696 = vmatpush1.msra.mxu0 0.0
      %1697 = vmatprep.subr.mxu0 0.0
      %1698 = vmatpush1.msra.mxu0 0.0
      %1699 = vmatprep.subr.mxu0 0.0
      %1700 = vmatpush1.msra.mxu0 0.0
      %1701 = vmatprep.subr.mxu0 0.0
      %1702 = vmatpush1.msra.mxu0 0.0
      %1703 = vmatprep.subr.mxu0 0.0
      %1704 = vmatpush1.msra.mxu0 0.0
      %1705 = vmatprep.subr.mxu0 0.0
      %1706 = vmatpush1.msra.mxu0 0.0
      %1707 = vmatprep.subr.mxu0 0.0
      %1708 = vmatpush1.msra.mxu0 0.0
      %1709 = vmatprep.subr.mxu0 0.0
      %1710 = vmatpush1.msra.mxu0 0.0
      %1711 = vmatprep.subr.mxu0 0.0
      %1712 = vmatpush1.msra.mxu0 0.0
      %1713 = vmatprep.subr.mxu0 0.0
      %1714 = vmatpush1.msra.mxu0 0.0
      %1715 = vmatprep.subr.mxu0 0.0
      %1716 = vmatpush1.msra.mxu0 0.0
      %1717 = vmatprep.subr.mxu0 0.0
      %1718 = vmatpush1.msra.mxu0 0.0
      %1719 = vmatprep.subr.mxu0 0.0
      %1720 = vmatpush1.msra.mxu0 0.0
      %1721 = vmatprep.subr.mxu0 0.0
      %1722 = vmatpush1.msra.mxu0 0.0
      %1723 = vmatprep.subr.mxu0 0.0
      %1724 = vmatpush1.msra.mxu0 0.0
      %1725 = vmatprep.subr.mxu0 0.0
      %1726 = vmatpush1.msra.mxu0 0.0
      %1727 = vmatprep.subr.mxu0 0.0
      %1728 = vmatpush1.msra.mxu0 0.0
      %1729 = vmatprep.subr.mxu0 0.0
      %1730 = vmatpush1.msra.mxu0 0.0
      %1731 = vmatprep.subr.mxu0 0.0
      %1732 = vmatpush1.msra.mxu0 0.0
      %1733 = vmatprep.subr.mxu0 0.0
      %1734 = vmatpush1.msra.mxu0 0.0
      %1735 = vmatprep.subr.mxu0 0.0
      %1736 = vmatpush1.msra.mxu0 0.0
      %1737 = vmatprep.subr.mxu0 0.0
      %1738 = vmatpush1.msra.mxu0 0.0
      %1739 = vmatprep.subr.mxu0 0.0
      %1740 = vmatpush1.msra.mxu0 0.0
      %1741 = vmatprep.subr.mxu0 0.0
      %1742 = vmatpush1.msra.mxu0 0.0
      %1743 = vmatprep.subr.mxu0 0.0
      %1744 = vmatpush1.msra.mxu0 0.0
      %1745 = vmatprep.subr.mxu0 0.0
      %1746 = vmatpush1.msra.mxu0 0.0
      %1747 = vmatprep.subr.mxu0 0.0
      %1748 = vmatpush1.msra.mxu0 0.0
      %1749 = vmatprep.mubr.f32.mxu0 0.0
      %1750 = vmatmul.mubr.f32.gmra.mrb[0].mxu0 %v1683
      %v1751 = vpop.f32.mrb[0].mxu0
      %v1752 = vadd.f32 0.0, %v1751
      %v1753 = vpop.f32.mrb[0].mxu0
      %v1754 = vadd.f32 0.0, %v1753
      %1755 = vdwg.mxu0
      %v1756 = vadd.f32 %v1678, %v1752
      %v1757 = vadd.f32 %v1679, %v1754
      %1758 = vrot.lane.b32.xlu0 %v1304, 127
      %v1759 = vpop.permute.xlu0 %1758
      %1760 = vrot.lane.b32.xlu0 %v1306, 127
      %v1761 = vpop.permute.xlu0 %1760
      %1762 = vrot.lane.b32.xlu0 %v1305, 127
      %v1763 = vpop.permute.xlu0 %1762
      %1764 = vrot.lane.b32.xlu0 %v1307, 127
      %v1765 = vpop.permute.xlu0 %1764
      %v1766 = vsel %vm820, %v1759, %v1763
      %v1767 = vsel %vm820, %v1761, %v1765
      %v1768 = vsel %vm820, %v1763, %v1759
      %v1769 = vsel %vm820, %v1765, %v1761
      %v1770 = vmul.f32 %v1766, %v829
      %v1771 = vmul.f32 %v1768, %v833
      %v1772 = vmul.f32 %v1767, %v829
      %v1773 = vmul.f32 %v1769, %v833
      %s1774 = scalar_lea.vmem %s3, 40
      %v1775 = vld [vmem:[%s1774] sm:$0x1f]
      %v1777 = vsel %vm1343, %v1775, 0
      %1779 = vmatprep.subr.mxu0 %v1771
      %1780 = vmatpush1.msra.mxu0 %v1770
      %1781 = vmatprep.subr.mxu0 %v1773
      %1782 = vmatpush1.msra.mxu0 %v1772
      %1783 = vmatprep.subr.mxu0 0.0
      %1784 = vmatpush1.msra.mxu0 0.0
      %1785 = vmatprep.subr.mxu0 0.0
      %1786 = vmatpush1.msra.mxu0 0.0
      %1787 = vmatprep.subr.mxu0 0.0
      %1788 = vmatpush1.msra.mxu0 0.0
      %1789 = vmatprep.subr.mxu0 0.0
      %1790 = vmatpush1.msra.mxu0 0.0
      %1791 = vmatprep.subr.mxu0 0.0
      %1792 = vmatpush1.msra.mxu0 0.0
      %1793 = vmatprep.subr.mxu0 0.0
      %1794 = vmatpush1.msra.mxu0 0.0
      %1795 = vmatprep.subr.mxu0 0.0
      %1796 = vmatpush1.msra.mxu0 0.0
      %1797 = vmatprep.subr.mxu0 0.0
      %1798 = vmatpush1.msra.mxu0 0.0
      %1799 = vmatprep.subr.mxu0 0.0
      %1800 = vmatpush1.msra.mxu0 0.0
      %1801 = vmatprep.subr.mxu0 0.0
      %1802 = vmatpush1.msra.mxu0 0.0
      %1803 = vmatprep.subr.mxu0 0.0
      %1804 = vmatpush1.msra.mxu0 0.0
      %1805 = vmatprep.subr.mxu0 0.0
      %1806 = vmatpush1.msra.mxu0 0.0
      %1807 = vmatprep.subr.mxu0 0.0
      %1808 = vmatpush1.msra.mxu0 0.0
      %1809 = vmatprep.subr.mxu0 0.0
      %1810 = vmatpush1.msra.mxu0 0.0
      %1811 = vmatprep.subr.mxu0 0.0
      %1812 = vmatpush1.msra.mxu0 0.0
      %1813 = vmatprep.subr.mxu0 0.0
      %1814 = vmatpush1.msra.mxu0 0.0
      %1815 = vmatprep.subr.mxu0 0.0
      %1816 = vmatpush1.msra.mxu0 0.0
      %1817 = vmatprep.subr.mxu0 0.0
      %1818 = vmatpush1.msra.mxu0 0.0
      %1819 = vmatprep.subr.mxu0 0.0
      %1820 = vmatpush1.msra.mxu0 0.0
      %1821 = vmatprep.subr.mxu0 0.0
      %1822 = vmatpush1.msra.mxu0 0.0
      %1823 = vmatprep.subr.mxu0 0.0
      %1824 = vmatpush1.msra.mxu0 0.0
      %1825 = vmatprep.subr.mxu0 0.0
      %1826 = vmatpush1.msra.mxu0 0.0
      %1827 = vmatprep.subr.mxu0 0.0
      %1828 = vmatpush1.msra.mxu0 0.0
      %1829 = vmatprep.subr.mxu0 0.0
      %1830 = vmatpush1.msra.mxu0 0.0
      %1831 = vmatprep.subr.mxu0 0.0
      %1832 = vmatpush1.msra.mxu0 0.0
      %1833 = vmatprep.subr.mxu0 0.0
      %1834 = vmatpush1.msra.mxu0 0.0
      %1835 = vmatprep.subr.mxu0 0.0
      %1836 = vmatpush1.msra.mxu0 0.0
      %1837 = vmatprep.subr.mxu0 0.0
      %1838 = vmatpush1.msra.mxu0 0.0
      %1839 = vmatprep.subr.mxu0 0.0
      %1840 = vmatpush1.msra.mxu0 0.0
      %1841 = vmatprep.subr.mxu0 0.0
      %1842 = vmatpush1.msra.mxu0 0.0
      %1843 = vmatprep.mubr.f32.mxu0 0.0
      %1844 = vmatmul.mubr.f32.gmra.mrb[0].mxu0 %v1777
      %v1845 = vpop.f32.mrb[0].mxu0
      %v1846 = vadd.f32 0.0, %v1845
      %v1847 = vpop.f32.mrb[0].mxu0
      %v1848 = vadd.f32 0.0, %v1847
      %1849 = vdwg.mxu0
      %v1850 = vadd.f32 %v1756, %v1846
      %v1851 = vadd.f32 %v1757, %v1848
      %1852 = vrot.lane.b32.xlu0 %v1304, 113
      %v1853 = vpop.permute.xlu0 %1852
      %1854 = vrot.lane.b32.xlu0 %v1306, 113
      %v1855 = vpop.permute.xlu0 %1854
      %1856 = vrot.lane.b32.xlu0 %v1305, 113
      %v1857 = vpop.permute.xlu0 %1856
      %1858 = vrot.lane.b32.xlu0 %v1307, 113
      %v1859 = vpop.permute.xlu0 %1858
      %v1860 = vsel %vm938, %v1853, %v1857
      %v1861 = vsel %vm938, %v1855, %v1859
      %v1862 = vsel %vm938, %v1857, %v1853
      %v1863 = vsel %vm938, %v1859, %v1855
      %v1864 = vmul.f32 %v1860, %v947
      %v1865 = vmul.f32 %v1862, %v951
      %v1866 = vmul.f32 %v1861, %v947
      %v1867 = vmul.f32 %v1863, %v951
      %s1868 = scalar_lea.vmem %s3, 48
      %v1869 = vld [vmem:[%s1868] sm:$0x1f]
      %v1871 = vsel %vm1343, %v1869, 0
      %1873 = vmatprep.subr.mxu0 %v1865
      %1874 = vmatpush1.msra.mxu0 %v1864
      %1875 = vmatprep.subr.mxu0 %v1867
      %1876 = vmatpush1.msra.mxu0 %v1866
      %1877 = vmatprep.subr.mxu0 0.0
      %1878 = vmatpush1.msra.mxu0 0.0
      %1879 = vmatprep.subr.mxu0 0.0
      %1880 = vmatpush1.msra.mxu0 0.0
      %1881 = vmatprep.subr.mxu0 0.0
      %1882 = vmatpush1.msra.mxu0 0.0
      %1883 = vmatprep.subr.mxu0 0.0
      %1884 = vmatpush1.msra.mxu0 0.0
      %1885 = vmatprep.subr.mxu0 0.0
      %1886 = vmatpush1.msra.mxu0 0.0
      %1887 = vmatprep.subr.mxu0 0.0
      %1888 = vmatpush1.msra.mxu0 0.0
      %1889 = vmatprep.subr.mxu0 0.0
      %1890 = vmatpush1.msra.mxu0 0.0
      %1891 = vmatprep.subr.mxu0 0.0
      %1892 = vmatpush1.msra.mxu0 0.0
      %1893 = vmatprep.subr.mxu0 0.0
      %1894 = vmatpush1.msra.mxu0 0.0
      %1895 = vmatprep.subr.mxu0 0.0
      %1896 = vmatpush1.msra.mxu0 0.0
      %1897 = vmatprep.subr.mxu0 0.0
      %1898 = vmatpush1.msra.mxu0 0.0
      %1899 = vmatprep.subr.mxu0 0.0
      %1900 = vmatpush1.msra.mxu0 0.0
      %1901 = vmatprep.subr.mxu0 0.0
      %1902 = vmatpush1.msra.mxu0 0.0
      %1903 = vmatprep.subr.mxu0 0.0
      %1904 = vmatpush1.msra.mxu0 0.0
      %1905 = vmatprep.subr.mxu0 0.0
      %1906 = vmatpush1.msra.mxu0 0.0
      %1907 = vmatprep.subr.mxu0 0.0
      %1908 = vmatpush1.msra.mxu0 0.0
      %1909 = vmatprep.subr.mxu0 0.0
      %1910 = vmatpush1.msra.mxu0 0.0
      %1911 = vmatprep.subr.mxu0 0.0
      %1912 = vmatpush1.msra.mxu0 0.0
      %1913 = vmatprep.subr.mxu0 0.0
      %1914 = vmatpush1.msra.mxu0 0.0
      %1915 = vmatprep.subr.mxu0 0.0
      %1916 = vmatpush1.msra.mxu0 0.0
      %1917 = vmatprep.subr.mxu0 0.0
      %1918 = vmatpush1.msra.mxu0 0.0
      %1919 = vmatprep.subr.mxu0 0.0
      %1920 = vmatpush1.msra.mxu0 0.0
      %1921 = vmatprep.subr.mxu0 0.0
      %1922 = vmatpush1.msra.mxu0 0.0
      %1923 = vmatprep.subr.mxu0 0.0
      %1924 = vmatpush1.msra.mxu0 0.0
      %1925 = vmatprep.subr.mxu0 0.0
      %1926 = vmatpush1.msra.mxu0 0.0
      %1927 = vmatprep.subr.mxu0 0.0
      %1928 = vmatpush1.msra.mxu0 0.0
      %1929 = vmatprep.subr.mxu0 0.0
      %1930 = vmatpush1.msra.mxu0 0.0
      %1931 = vmatprep.subr.mxu0 0.0
      %1932 = vmatpush1.msra.mxu0 0.0
      %1933 = vmatprep.subr.mxu0 0.0
      %1934 = vmatpush1.msra.mxu0 0.0
      %1935 = vmatprep.subr.mxu0 0.0
      %1936 = vmatpush1.msra.mxu0 0.0
      %1937 = vmatprep.mubr.f32.mxu0 0.0
      %1938 = vmatmul.mubr.f32.gmra.mrb[0].mxu0 %v1871
      %v1939 = vpop.f32.mrb[0].mxu0
      %v1940 = vadd.f32 0.0, %v1939
      %v1941 = vpop.f32.mrb[0].mxu0
      %v1942 = vadd.f32 0.0, %v1941
      %1943 = vdwg.mxu0
      %v1944 = vadd.f32 %v1850, %v1940
      %v1945 = vadd.f32 %v1851, %v1942
      %1946 = vrot.lane.b32.xlu0 %v1304, 112
      %v1947 = vpop.permute.xlu0 %1946
      %1948 = vrot.lane.b32.xlu0 %v1306, 112
      %v1949 = vpop.permute.xlu0 %1948
      %1950 = vrot.lane.b32.xlu0 %v1305, 112
      %v1951 = vpop.permute.xlu0 %1950
      %1952 = vrot.lane.b32.xlu0 %v1307, 112
      %v1953 = vpop.permute.xlu0 %1952
      %v1954 = vsel %vm1056, %v1947, %v1951
      %v1955 = vsel %vm1056, %v1949, %v1953
      %v1956 = vsel %vm1056, %v1951, %v1947
      %v1957 = vsel %vm1056, %v1953, %v1949
      %v1958 = vmul.f32 %v1954, %v1065
      %v1959 = vmul.f32 %v1956, %v1069
      %v1960 = vmul.f32 %v1955, %v1065
      %v1961 = vmul.f32 %v1957, %v1069
      %s1962 = scalar_lea.vmem %s3, 56
      %v1963 = vld [vmem:[%s1962] sm:$0x1f]
      %v1965 = vsel %vm1343, %v1963, 0
      %1967 = vmatprep.subr.mxu0 %v1959
      %1968 = vmatpush1.msra.mxu0 %v1958
      %1969 = vmatprep.subr.mxu0 %v1961
      %1970 = vmatpush1.msra.mxu0 %v1960
      %1971 = vmatprep.subr.mxu0 0.0
      %1972 = vmatpush1.msra.mxu0 0.0
      %1973 = vmatprep.subr.mxu0 0.0
      %1974 = vmatpush1.msra.mxu0 0.0
      %1975 = vmatprep.subr.mxu0 0.0
      %1976 = vmatpush1.msra.mxu0 0.0
      %1977 = vmatprep.subr.mxu0 0.0
      %1978 = vmatpush1.msra.mxu0 0.0
      %1979 = vmatprep.subr.mxu0 0.0
      %1980 = vmatpush1.msra.mxu0 0.0
      %1981 = vmatprep.subr.mxu0 0.0
      %1982 = vmatpush1.msra.mxu0 0.0
      %1983 = vmatprep.subr.mxu0 0.0
      %1984 = vmatpush1.msra.mxu0 0.0
      %1985 = vmatprep.subr.mxu0 0.0
      %1986 = vmatpush1.msra.mxu0 0.0
      %1987 = vmatprep.subr.mxu0 0.0
      %1988 = vmatpush1.msra.mxu0 0.0
      %1989 = vmatprep.subr.mxu0 0.0
      %1990 = vmatpush1.msra.mxu0 0.0
      %1991 = vmatprep.subr.mxu0 0.0
      %1992 = vmatpush1.msra.mxu0 0.0
      %1993 = vmatprep.subr.mxu0 0.0
      %1994 = vmatpush1.msra.mxu0 0.0
      %1995 = vmatprep.subr.mxu0 0.0
      %1996 = vmatpush1.msra.mxu0 0.0
      %1997 = vmatprep.subr.mxu0 0.0
      %1998 = vmatpush1.msra.mxu0 0.0
      %1999 = vmatprep.subr.mxu0 0.0
      %2000 = vmatpush1.msra.mxu0 0.0
      %2001 = vmatprep.subr.mxu0 0.0
      %2002 = vmatpush1.msra.mxu0 0.0
      %2003 = vmatprep.subr.mxu0 0.0
      %2004 = vmatpush1.msra.mxu0 0.0
      %2005 = vmatprep.subr.mxu0 0.0
      %2006 = vmatpush1.msra.mxu0 0.0
      %2007 = vmatprep.subr.mxu0 0.0
      %2008 = vmatpush1.msra.mxu0 0.0
      %2009 = vmatprep.subr.mxu0 0.0
      %2010 = vmatpush1.msra.mxu0 0.0
      %2011 = vmatprep.subr.mxu0 0.0
      %2012 = vmatpush1.msra.mxu0 0.0
      %2013 = vmatprep.subr.mxu0 0.0
      %2014 = vmatpush1.msra.mxu0 0.0
      %2015 = vmatprep.subr.mxu0 0.0
      %2016 = vmatpush1.msra.mxu0 0.0
      %2017 = vmatprep.subr.mxu0 0.0
      %2018 = vmatpush1.msra.mxu0 0.0
      %2019 = vmatprep.subr.mxu0 0.0
      %2020 = vmatpush1.msra.mxu0 0.0
      %2021 = vmatprep.subr.mxu0 0.0
      %2022 = vmatpush1.msra.mxu0 0.0
      %2023 = vmatprep.subr.mxu0 0.0
      %2024 = vmatpush1.msra.mxu0 0.0
      %2025 = vmatprep.subr.mxu0 0.0
      %2026 = vmatpush1.msra.mxu0 0.0
      %2027 = vmatprep.subr.mxu0 0.0
      %2028 = vmatpush1.msra.mxu0 0.0
      %2029 = vmatprep.subr.mxu0 0.0
      %2030 = vmatpush1.msra.mxu0 0.0
      %2031 = vmatprep.mubr.f32.mxu0 0.0
      %2032 = vmatmul.mubr.f32.gmra.mrb[0].mxu0 %v1965
      %v2033 = vpop.f32.mrb[0].mxu0
      %v2034 = vadd.f32 0.0, %v2033
      %v2035 = vpop.f32.mrb[0].mxu0
      %v2036 = vadd.f32 0.0, %v2035
      %2037 = vdwg.mxu0
      %v2038 = vadd.f32 %v1944, %v2034
      %v2039 = vadd.f32 %v1945, %v2036
      %2040 = vrot.lane.b32.xlu0 %v1304, 111
      %v2041 = vpop.permute.xlu0 %2040
      %2042 = vrot.lane.b32.xlu0 %v1306, 111
      %v2043 = vpop.permute.xlu0 %2042
      %2044 = vrot.lane.b32.xlu0 %v1305, 111
      %v2045 = vpop.permute.xlu0 %2044
      %2046 = vrot.lane.b32.xlu0 %v1307, 111
      %v2047 = vpop.permute.xlu0 %2046
      %v2048 = vsel %vm1174, %v2041, %v2045
      %v2049 = vsel %vm1174, %v2043, %v2047
      %v2050 = vsel %vm1174, %v2045, %v2041
      %v2051 = vsel %vm1174, %v2047, %v2043
      %v2052 = vmul.f32 %v2048, %v1183
      %v2053 = vmul.f32 %v2050, %v1187
      %v2054 = vmul.f32 %v2049, %v1183
      %v2055 = vmul.f32 %v2051, %v1187
      %s2056 = scalar_lea.vmem %s3, 64
      %v2057 = vld [vmem:[%s2056] sm:$0x1f]
      %v2059 = vsel %vm1343, %v2057, 0
      %2061 = vmatprep.subr.mxu0 %v2053
      %2062 = vmatpush1.msra.mxu0 %v2052
      %2063 = vmatprep.subr.mxu0 %v2055
      %2064 = vmatpush1.msra.mxu0 %v2054
      %2065 = vmatprep.subr.mxu0 0.0
      %2066 = vmatpush1.msra.mxu0 0.0
      %2067 = vmatprep.subr.mxu0 0.0
      %2068 = vmatpush1.msra.mxu0 0.0
      %2069 = vmatprep.subr.mxu0 0.0
      %2070 = vmatpush1.msra.mxu0 0.0
      %2071 = vmatprep.subr.mxu0 0.0
      %2072 = vmatpush1.msra.mxu0 0.0
      %2073 = vmatprep.subr.mxu0 0.0
      %2074 = vmatpush1.msra.mxu0 0.0
      %2075 = vmatprep.subr.mxu0 0.0
      %2076 = vmatpush1.msra.mxu0 0.0
      %2077 = vmatprep.subr.mxu0 0.0
      %2078 = vmatpush1.msra.mxu0 0.0
      %2079 = vmatprep.subr.mxu0 0.0
      %2080 = vmatpush1.msra.mxu0 0.0
      %2081 = vmatprep.subr.mxu0 0.0
      %2082 = vmatpush1.msra.mxu0 0.0
      %2083 = vmatprep.subr.mxu0 0.0
      %2084 = vmatpush1.msra.mxu0 0.0
      %2085 = vmatprep.subr.mxu0 0.0
      %2086 = vmatpush1.msra.mxu0 0.0
      %2087 = vmatprep.subr.mxu0 0.0
      %2088 = vmatpush1.msra.mxu0 0.0
      %2089 = vmatprep.subr.mxu0 0.0
      %2090 = vmatpush1.msra.mxu0 0.0
      %2091 = vmatprep.subr.mxu0 0.0
      %2092 = vmatpush1.msra.mxu0 0.0
      %2093 = vmatprep.subr.mxu0 0.0
      %2094 = vmatpush1.msra.mxu0 0.0
      %2095 = vmatprep.subr.mxu0 0.0
      %2096 = vmatpush1.msra.mxu0 0.0
      %2097 = vmatprep.subr.mxu0 0.0
      %2098 = vmatpush1.msra.mxu0 0.0
      %2099 = vmatprep.subr.mxu0 0.0
      %2100 = vmatpush1.msra.mxu0 0.0
      %2101 = vmatprep.subr.mxu0 0.0
      %2102 = vmatpush1.msra.mxu0 0.0
      %2103 = vmatprep.subr.mxu0 0.0
      %2104 = vmatpush1.msra.mxu0 0.0
      %2105 = vmatprep.subr.mxu0 0.0
      %2106 = vmatpush1.msra.mxu0 0.0
      %2107 = vmatprep.subr.mxu0 0.0
      %2108 = vmatpush1.msra.mxu0 0.0
      %2109 = vmatprep.subr.mxu0 0.0
      %2110 = vmatpush1.msra.mxu0 0.0
      %2111 = vmatprep.subr.mxu0 0.0
      %2112 = vmatpush1.msra.mxu0 0.0
      %2113 = vmatprep.subr.mxu0 0.0
      %2114 = vmatpush1.msra.mxu0 0.0
      %2115 = vmatprep.subr.mxu0 0.0
      %2116 = vmatpush1.msra.mxu0 0.0
      %2117 = vmatprep.subr.mxu0 0.0
      %2118 = vmatpush1.msra.mxu0 0.0
      %2119 = vmatprep.subr.mxu0 0.0
      %2120 = vmatpush1.msra.mxu0 0.0
      %2121 = vmatprep.subr.mxu0 0.0
      %2122 = vmatpush1.msra.mxu0 0.0
      %2123 = vmatprep.subr.mxu0 0.0
      %2124 = vmatpush1.msra.mxu0 0.0
      %2125 = vmatprep.mubr.f32.mxu0 0.0
      %2126 = vmatmul.mubr.f32.gmra.mrb[0].mxu0 %v2059
      %v2127 = vpop.f32.mrb[0].mxu0
      %v2128 = vadd.f32 0.0, %v2127
      %v2129 = vpop.f32.mrb[0].mxu0
      %v2130 = vadd.f32 0.0, %v2129
      %2131 = vdwg.mxu0
      %v2132 = vadd.f32 %v2038, %v2128
      %v2133 = vadd.f32 %v2039, %v2130
      %v2134 = vld [vmem:[%s4] sm:$0x1f]
      %2136 = vset.pattern.permute.xlu0 0
      %2137 = vperm.xlu0 %2136, %v2134
      %v2138 = vpop.permute.xlu0 %2137
      %v2140 = vadd.f32 %v2132, %v2138
      %v2141 = vadd.f32 %v2133, %v2138
      %2142 = vst [vmem:[%s251] sm:$0x1f] %v2140
      %2143 = vst [vmem:[%s251 + $0x8] sm:$0x1f] %v2141
      %p2144 = scmp.lt.s32.totalorder %s17, 1
      %s2145 = scalar_select %p2144, %s17, 1
      %s2146 = smul.addr %s2145, 2
      %s2147 = smul.addr %s2146, 8
      %s2148 = scalar_lea.vmem %s6, %s2147
      // Predicated region
      $region45: #{flow_occ.1} parent=43 // pred_check
        %p2149 = pneg %p166
      $region46: #{flow_occ.1} parent=43 // pred_check_branch
        %2151 = sbr.rel (%p2149) target = $region48
      $region47: #{flow_occ.1} parent=43 // pred_region
        _
      $region48: #{flow_occ.1} parent=43 // pred_fallthru
        _
    $region44: #{flow_occ.1} parent=5 // pred_fallthru
      _
    %p2152 = scmp.le.s32.totalorder 2, %s12
    // Predicated region
    $region49: #{flow_occ.1} parent=5 // pred_check
      %p2153 = pneg %p2152
    $region50: #{flow_occ.1} parent=5 // pred_check_branch
      %2155 = sbr.rel (%p2153) target = $region52
    $region51: #{flow_occ.1} parent=5 // pred_region
      %s2156 = ssub.s32 %s12, 2
      // Predicated region
      $region53: #{flow_occ.1} parent=51 // pred_check
        %p2157 = pneg %p172
      $region54: #{flow_occ.1} parent=51 // pred_check_branch
        %2159 = sbr.rel (%p2157) target = $region56
      $region55: #{flow_occ.1} parent=51 // pred_region
        %p2160 = scmp.lt.s32.totalorder %s18, 1
        %s2161 = scalar_select %p2160, %s18, 1
        %s2162 = smul.addr %s2161, 2
        %s2163 = smul.addr %s2162, 8
        %s2164 = scalar_lea.vmem %s6, %s2163
      $region56: #{flow_occ.1} parent=51 // pred_fallthru
        _
    $region52: #{flow_occ.1} parent=5 // pred_fallthru
      _
  $region6: #{flow_occ.1} parent=0 // loop_footer
    %s16 = sadd.s32 1, %s12
  $region7: #{flow_occ.1} parent=0 // loop_footer_branch
    %11 = sbr.rel target = $region3
  $region8: #{flow_occ.1} parent=0 // loop_exit
    _

</llo_original>
